<compile_context>
chip_gen: v6e
topology: v6e:2x2x1
jax: 0.10.0
libtpu: 0.0.40
codegen_flags: <defaults>
</compile_context>

<pallas_src>
import math

import jax
import jax.numpy as jnp
from jax.experimental import pallas as pl
from jax.experimental.pallas import tpu as pltpu


B_CHUNK = 8  # f32 sublane width; batch is padded up to a multiple of this.


# ----------------------------------------------------------------------------
# Pallas kernel
# ----------------------------------------------------------------------------
def make_lstm_kernel(num_layers: int, seq_len: int, hidden: int,
                     b_chunk: int, with_init_state: bool):
    """Builds a kernel closed over static sizes.

    Ref order:
      inputs : x (T, Bc, E) f32,
               [h0, c0] (L, Bc, H) f32 each           (only if with_init_state)
               per layer: w_ih (D_in,4H) bf16, w_hh (H,4H) bf16, b (1,4H) f32
               fc_w (H, K) bf16, fc_b (1, K) f32
      output : out (Bc, K) f32
      scratch: seq (T, Bc, H) bf16   (inter-layer activations)
    """
    H, T, L = hidden, seq_len, num_layers

    def kernel(*refs):
        idx = 0
        x_ref = refs[idx]; idx += 1
        if with_init_state:
            h0_ref, c0_ref = refs[idx], refs[idx + 1]
            idx += 2
        layer_refs = refs[idx:idx + 3 * L]; idx += 3 * L
        fc_w_ref, fc_b_ref = refs[idx], refs[idx + 1]; idx += 2
        out_ref = refs[idx]
        seq_ref = refs[idx + 1]

        h_final = None
        for l in range(L):  # static unroll over layers
            w_ih = layer_refs[3 * l][...]       # (D_in, 4H) bf16
            w_hh = layer_refs[3 * l + 1][...]   # (H, 4H)    bf16
            b = layer_refs[3 * l + 2][...]      # (1, 4H)    f32 (b_ih + b_hh)

            # ---- batched input projection, hoisted out of the recurrence ----
            if l == 0:
                seq_in = x_ref[...].astype(jnp.bfloat16)   # (T, Bc, E)
            else:
                seq_in = seq_ref[...]                      # (T, Bc, H) bf16
            d_in = seq_in.shape[-1]
            gx = jnp.dot(seq_in.reshape(T * b_chunk, d_in), w_ih,
                         preferred_element_type=jnp.float32) + b   # (T*Bc, 4H)
            gx = gx.reshape(T, b_chunk, 4 * H)                      # f32

            # ---- initial state ----
            if with_init_state:
                h = h0_ref[l]                                       # (Bc, H) f32
                c = c0_ref[l]
            else:
                h = jnp.zeros((b_chunk, H), jnp.float32)
                c = jnp.zeros((b_chunk, H), jnp.float32)

            # ---- recurrence, fully unrolled; only h @ W_hh is serial ----
            for t in range(T):  # static unroll over timesteps
                gates = gx[t] + jnp.dot(h.astype(jnp.bfloat16), w_hh,
                                        preferred_element_type=jnp.float32)
                # One sigmoid + one tanh over the whole (Bc, 4H) gates vreg.
                sig = jax.nn.sigmoid(gates)
                tan = jnp.tanh(gates)
                # PyTorch LSTM gate order: i, f, g, o
                i_g = sig[:, 0 * H:1 * H]
                f_g = sig[:, 1 * H:2 * H]
                g_g = tan[:, 2 * H:3 * H]
                o_g = sig[:, 3 * H:4 * H]
                c = f_g * c + i_g * g_g
                h = o_g * jnp.tanh(c)
                if l < L - 1:
                    seq_ref[t] = h.astype(jnp.bfloat16)   # feed next layer
            h_final = h

        logits = (jnp.dot(h_final.astype(jnp.bfloat16), fc_w_ref[...],
                          preferred_element_type=jnp.float32)
                  + fc_b_ref[...])
        out_ref[...] = jax.nn.sigmoid(logits)

    return kernel


# ----------------------------------------------------------------------------
# Wrapper (glue: embedding gather, batch padding, weight packing, pallas_call)
# ----------------------------------------------------------------------------
def g_model_forward(tokens, params, train_flag=False, key=None):
    """Equivalent of G_Model.forward(input_tensor, train_flag)."""
    emb_table = params["emb"]                 # (num_keys, E)
    w_ih_list = params["w_ih"]                # [(4H, D_in_l)]
    w_hh_list = params["w_hh"]                # [(4H, H)]
    b_ih_list = params["b_ih"]                # [(4H,)]
    b_hh_list = params["b_hh"]                # [(4H,)]
    fc_w = params["fc_w"]                     # (K, H)
    fc_b = params["fc_b"]                     # (K,)

    B, T = tokens.shape
    E = emb_table.shape[1]
    L = len(w_hh_list)
    H = w_hh_list[0].shape[1]
    K = fc_w.shape[0]

    # Pad batch up to a multiple of B_CHUNK (sublane width); pad rows dropped
    # from the output.
    Bp = ((B + B_CHUNK - 1) // B_CHUNK) * B_CHUNK
    pad = Bp - B
    tokens_p = jnp.pad(tokens, ((0, pad), (0, 0))) if pad else tokens

    # Embedding lookup (gather) — plain-JAX glue; time-major for the kernel.
    x = emb_table[tokens_p].astype(jnp.float32)            # (Bp, T, E)
    x = jnp.transpose(x, (1, 0, 2))                        # (T, Bp, E)

    # Weight packing: transpose so the kernel does x @ W; bf16 for the MXU,
    # biases (b_ih + b_hh) fused and kept in f32.
    layer_args = []
    for l in range(L):
        layer_args.append(jnp.transpose(w_ih_list[l]).astype(jnp.bfloat16))   # (D_in, 4H)
        layer_args.append(jnp.transpose(w_hh_list[l]).astype(jnp.bfloat16))   # (H, 4H)
        layer_args.append((b_ih_list[l] + b_hh_list[l]).reshape(1, 4 * H)
                          .astype(jnp.float32))                               # (1, 4H)
    fc_w_t = jnp.transpose(fc_w).astype(jnp.bfloat16)                         # (H, K)
    fc_b2 = fc_b.reshape(1, K).astype(jnp.float32)                            # (1, K)

    def _full_spec(shape):
        nd = len(shape)
        return pl.BlockSpec(shape, lambda i, _nd=nd: (0,) * _nd)

    in_specs = [pl.BlockSpec((T, B_CHUNK, E), lambda i: (0, i, 0))]
    args = [x]

    if train_flag:
        if key is None:
            key = jax.random.PRNGKey(0)
        kh, kc = jax.random.split(key)
        h0 = jax.random.normal(kh, (L, Bp, H), dtype=jnp.float32)
        c0 = jax.random.normal(kc, (L, Bp, H), dtype=jnp.float32)
        in_specs += [pl.BlockSpec((L, B_CHUNK, H), lambda i: (0, i, 0)),
                     pl.BlockSpec((L, B_CHUNK, H), lambda i: (0, i, 0))]
        args += [h0, c0]

    for a in layer_args:
        in_specs.append(_full_spec(a.shape))
    args += layer_args
    in_specs += [_full_spec(fc_w_t.shape), _full_spec(fc_b2.shape)]
    args += [fc_w_t, fc_b2]

    out = pl.pallas_call(
        make_lstm_kernel(L, T, H, B_CHUNK, with_init_state=train_flag),
        grid=(Bp // B_CHUNK,),
        out_shape=jax.ShapeDtypeStruct((Bp, K), jnp.float32),
        in_specs=in_specs,
        out_specs=pl.BlockSpec((B_CHUNK, K), lambda i: (i, 0)),
        scratch_shapes=[pltpu.VMEM((T, B_CHUNK, H), jnp.bfloat16)],
        compiler_params=pltpu.CompilerParams(
            dimension_semantics=("parallel",)),
    )(*args)
    return out[:B]


# ----------------------------------------------------------------------------
# Pure-JAX reference (for correctness check)
# ----------------------------------------------------------------------------
def reference_forward(tokens, params, h0, c0):
    x = params["emb"][tokens].astype(jnp.float32)  # (B, T, E)
    L = len(params["w_hh"])
    H = params["w_hh"][0].shape[1]
    inp = x
    h = None
    for l in range(L):
        w_ih = params["w_ih"][l]
        w_hh = params["w_hh"][l]
        b = params["b_ih"][l] + params["b_hh"][l]
        h = h0[l]
        c = c0[l]
        outs = []
        for t in range(inp.shape[1]):
            gates = inp[:, t, :] @ w_ih.T + h @ w_hh.T + b
            i_g = jax.nn.sigmoid(gates[:, 0 * H:1 * H])
            f_g = jax.nn.sigmoid(gates[:, 1 * H:2 * H])
            g_g = jnp.tanh(gates[:, 2 * H:3 * H])
            o_g = jax.nn.sigmoid(gates[:, 3 * H:4 * H])
            c = f_g * c + i_g * g_g
            h = o_g * jnp.tanh(c)
            outs.append(h)
        inp = jnp.stack(outs, axis=1)
    logits = h @ params["fc_w"].T + params["fc_b"]
    return jax.nn.sigmoid(logits)


# ----------------------------------------------------------------------------
# Deterministic parameter init (synthetic, PyTorch-like uniform ranges)
# ----------------------------------------------------------------------------
def init_params(key, num_keys, emb_dim, input_size, hidden, num_layers):
    assert input_size == emb_dim, "LSTM input_size must equal emb_dimension"
    keys = jax.random.split(key, 3 + 4 * num_layers)
    ki = iter(keys)
    s = 1.0 / math.sqrt(hidden)
    params = {
        "emb": jax.random.normal(next(ki), (num_keys, emb_dim), jnp.float32),
        "w_ih": [], "w_hh": [], "b_ih": [], "b_hh": [],
    }
    for l in range(num_layers):
        d_in = input_size if l == 0 else hidden
        params["w_ih"].append(
            jax.random.uniform(next(ki), (4 * hidden, d_in), jnp.float32, -s, s))
        params["w_hh"].append(
            jax.random.uniform(next(ki), (4 * hidden, hidden), jnp.float32, -s, s))
        params["b_ih"].append(
            jax.random.uniform(next(ki), (4 * hidden,), jnp.float32, -s, s))
        params["b_hh"].append(
            jax.random.uniform(next(ki), (4 * hidden,), jnp.float32, -s, s))
    params["fc_w"] = jax.random.uniform(next(ki), (num_keys, hidden),
                                        jnp.float32, -s, s)
    params["fc_b"] = jax.random.uniform(next(ki), (num_keys,),
                                        jnp.float32, -s, s)
    return params


if __name__ == "__main__":
    # Small shapes consistent with the module's forward:
    batch, seq_len = 2, 8
    num_keys, emb_dim = 16, 32
    input_size, hidden_size, num_layers = 32, 32, 2

    root = jax.random.PRNGKey(0)
    k_param, k_tok = jax.random.split(root)
    params = init_params(k_param, num_keys, emb_dim, input_size,
                         hidden_size, num_layers)
    tokens = jax.random.randint(k_tok, (batch, seq_len), 0, num_keys,
                                dtype=jnp.int32)

    # Eval path (train_flag=False → zero initial states), fully deterministic.
    out = g_model_forward(tokens, params, train_flag=False)
    out = jax.block_until_ready(out)

    h0 = jnp.zeros((num_layers, batch, hidden_size), jnp.float32)
    c0 = jnp.zeros((num_layers, batch, hidden_size), jnp.float32)
    ref = reference_forward(tokens, params, h0, c0)

    assert out.shape == (batch, num_keys)
    assert bool(jnp.all(jnp.isfinite(out)))
    assert jnp.allclose(out, ref, atol=1e-2, rtol=1e-2)

    print("KERNEL_OK")
</pallas_src>

<mosaic_0001>
module attributes {stable_mosaic.version = 11 : i64} {
  func.func @kernel(%arg0: i32, %arg1: memref<8x8x32xf32, #tpu.memory_space<vmem>>, %arg2: memref<32x128xbf16, #tpu.memory_space<vmem>>, %arg3: memref<32x128xbf16, #tpu.memory_space<vmem>>, %arg4: memref<1x128xf32, #tpu.memory_space<vmem>>, %arg5: memref<32x128xbf16, #tpu.memory_space<vmem>>, %arg6: memref<32x128xbf16, #tpu.memory_space<vmem>>, %arg7: memref<1x128xf32, #tpu.memory_space<vmem>>, %arg8: memref<32x16xbf16, #tpu.memory_space<vmem>>, %arg9: memref<1x16xf32, #tpu.memory_space<vmem>>, %arg10: memref<8x16xf32, #tpu.memory_space<vmem>>, %arg11: memref<8x8x32xbf16, #tpu.memory_space<vmem>>) attributes {dimension_semantics = [#tpu.dimension_semantics<parallel>], iteration_bounds = array<i64: 1>, scalar_prefetch = 0 : i64, scratch_operands = 1 : i64, tpu.core_type = #tpu.core_type<tc>, window_params = [{transform_indices = @transform_0, window_bounds = array<i64: 8, 8, 32>}, {pipeline_mode = #tpu.pipeline_mode<synchronous>, transform_indices = @transform_1, window_bounds = array<i64: 32, 128>}, {pipeline_mode = #tpu.pipeline_mode<synchronous>, transform_indices = @transform_2, window_bounds = array<i64: 32, 128>}, {pipeline_mode = #tpu.pipeline_mode<synchronous>, transform_indices = @transform_3, window_bounds = array<i64: 1, 128>}, {pipeline_mode = #tpu.pipeline_mode<synchronous>, transform_indices = @transform_4, window_bounds = array<i64: 32, 128>}, {pipeline_mode = #tpu.pipeline_mode<synchronous>, transform_indices = @transform_5, window_bounds = array<i64: 32, 128>}, {pipeline_mode = #tpu.pipeline_mode<synchronous>, transform_indices = @transform_6, window_bounds = array<i64: 1, 128>}, {pipeline_mode = #tpu.pipeline_mode<synchronous>, transform_indices = @transform_7, window_bounds = array<i64: 32, 16>}, {pipeline_mode = #tpu.pipeline_mode<synchronous>, transform_indices = @transform_8, window_bounds = array<i64: 1, 16>}, {transform_indices = @transform_9, window_bounds = array<i64: 8, 16>}]} {
    %c0 = arith.constant 0 : index
    %c0_0 = arith.constant 0 : index
    %0 = vector.load %arg2[%c0, %c0_0] : memref<32x128xbf16, #tpu.memory_space<vmem>>, vector<32x128xbf16>
    %c0_1 = arith.constant 0 : index
    %c0_2 = arith.constant 0 : index
    %1 = vector.load %arg3[%c0_1, %c0_2] : memref<32x128xbf16, #tpu.memory_space<vmem>>, vector<32x128xbf16>
    %c0_3 = arith.constant 0 : index
    %c0_4 = arith.constant 0 : index
    %2 = vector.load %arg4[%c0_3, %c0_4] : memref<1x128xf32, #tpu.memory_space<vmem>>, vector<1x128xf32>
    %c0_5 = arith.constant 0 : index
    %c0_6 = arith.constant 0 : index
    %c0_7 = arith.constant 0 : index
    %3 = vector.load %arg1[%c0_5, %c0_6, %c0_7] : memref<8x8x32xf32, #tpu.memory_space<vmem>>, vector<8x8x32xf32>
    %4 = arith.truncf %3 : vector<8x8x32xf32> to vector<8x8x32xbf16>
    %5 = vector.shape_cast %4 : vector<8x8x32xbf16> to vector<64x32xbf16>
    %cst = arith.constant dense<0.000000e+00> : vector<64x128xf32>
    %6 = tpu.matmul %5, %0, %cst {dimension_numbers = #tpu.dot_dimension_numbers<[1], [0], [0], [1], [0, 0, 1, 1], [], []>} : vector<64x32xbf16>, vector<32x128xbf16>, vector<64x128xf32> -> vector<64x128xf32>
    %7 = vector.broadcast %2 : vector<1x128xf32> to vector<64x128xf32>
    %8 = arith.addf %6, %7 : vector<64x128xf32>
    %9 = vector.shape_cast %8 : vector<64x128xf32> to vector<8x8x128xf32>
    %cst_8 = arith.constant 0.000000e+00 : f32
    %10 = vector.broadcast %cst_8 : f32 to vector<8x32xf32>
    %cst_9 = arith.constant 0.000000e+00 : f32
    %11 = vector.broadcast %cst_9 : f32 to vector<8x32xf32>
    %12 = vector.extract_strided_slice %9 {offsets = [0, 0, 0], sizes = [1, 8, 128], strides = [1, 1, 1]} : vector<8x8x128xf32> to vector<1x8x128xf32>
    %13 = vector.shape_cast %12 : vector<1x8x128xf32> to vector<8x128xf32>
    %14 = arith.truncf %10 : vector<8x32xf32> to vector<8x32xbf16>
    %cst_10 = arith.constant dense<0.000000e+00> : vector<8x128xf32>
    %15 = tpu.matmul %14, %1, %cst_10 {dimension_numbers = #tpu.dot_dimension_numbers<[1], [0], [0], [1], [0, 0, 1, 1], [], []>} : vector<8x32xbf16>, vector<32x128xbf16>, vector<8x128xf32> -> vector<8x128xf32>
    %16 = arith.addf %13, %15 : vector<8x128xf32>
    %17 = arith.negf %16 : vector<8x128xf32>
    %18 = math.exp %17 : vector<8x128xf32>
    %cst_11 = arith.constant 1.000000e+00 : f32
    %19 = vector.broadcast %cst_11 : f32 to vector<8x128xf32>
    %20 = arith.addf %19, %18 : vector<8x128xf32>
    %21 = arith.divf %19, %20 : vector<8x128xf32>
    %22 = math.tanh %16 : vector<8x128xf32>
    %23 = vector.extract_strided_slice %21 {offsets = [0, 0], sizes = [8, 32], strides = [1, 1]} : vector<8x128xf32> to vector<8x32xf32>
    %24 = vector.extract_strided_slice %21 {offsets = [0, 32], sizes = [8, 32], strides = [1, 1]} : vector<8x128xf32> to vector<8x32xf32>
    %25 = vector.extract_strided_slice %22 {offsets = [0, 64], sizes = [8, 32], strides = [1, 1]} : vector<8x128xf32> to vector<8x32xf32>
    %26 = vector.extract_strided_slice %21 {offsets = [0, 96], sizes = [8, 32], strides = [1, 1]} : vector<8x128xf32> to vector<8x32xf32>
    %27 = arith.mulf %24, %11 : vector<8x32xf32>
    %28 = arith.mulf %23, %25 : vector<8x32xf32>
    %29 = arith.addf %27, %28 : vector<8x32xf32>
    %30 = math.tanh %29 : vector<8x32xf32>
    %31 = arith.mulf %26, %30 : vector<8x32xf32>
    %32 = arith.truncf %31 : vector<8x32xf32> to vector<8x32xbf16>
    %c0_12 = arith.constant 0 : index
    %c0_13 = arith.constant 0 : index
    %c0_14 = arith.constant 0 : index
    %33 = vector.load %arg11[%c0_12, %c0_13, %c0_14] : memref<8x8x32xbf16, #tpu.memory_space<vmem>>, vector<1x8x32xbf16>
    %34 = vector.shape_cast %33 : vector<1x8x32xbf16> to vector<8x32xbf16>
    %35 = vector.shape_cast %32 : vector<8x32xbf16> to vector<1x8x32xbf16>
    tpu.vector_store %arg11[%c0_12, %c0_13, %c0_14], %35 {strides = array<i32>} : memref<8x8x32xbf16, #tpu.memory_space<vmem>>, vector<1x8x32xbf16>,
    %36 = vector.extract_strided_slice %9 {offsets = [1, 0, 0], sizes = [1, 8, 128], strides = [1, 1, 1]} : vector<8x8x128xf32> to vector<1x8x128xf32>
    %37 = vector.shape_cast %36 : vector<1x8x128xf32> to vector<8x128xf32>
    %38 = arith.truncf %31 : vector<8x32xf32> to vector<8x32xbf16>
    %cst_15 = arith.constant dense<0.000000e+00> : vector<8x128xf32>
    %39 = tpu.matmul %38, %1, %cst_15 {dimension_numbers = #tpu.dot_dimension_numbers<[1], [0], [0], [1], [0, 0, 1, 1], [], []>} : vector<8x32xbf16>, vector<32x128xbf16>, vector<8x128xf32> -> vector<8x128xf32>
    %40 = arith.addf %37, %39 : vector<8x128xf32>
    %41 = arith.negf %40 : vector<8x128xf32>
    %42 = math.exp %41 : vector<8x128xf32>
    %cst_16 = arith.constant 1.000000e+00 : f32
    %43 = vector.broadcast %cst_16 : f32 to vector<8x128xf32>
    %44 = arith.addf %43, %42 : vector<8x128xf32>
    %45 = arith.divf %43, %44 : vector<8x128xf32>
    %46 = math.tanh %40 : vector<8x128xf32>
    %47 = vector.extract_strided_slice %45 {offsets = [0, 0], sizes = [8, 32], strides = [1, 1]} : vector<8x128xf32> to vector<8x32xf32>
    %48 = vector.extract_strided_slice %45 {offsets = [0, 32], sizes = [8, 32], strides = [1, 1]} : vector<8x128xf32> to vector<8x32xf32>
    %49 = vector.extract_strided_slice %46 {offsets = [0, 64], sizes = [8, 32], strides = [1, 1]} : vector<8x128xf32> to vector<8x32xf32>
    %50 = vector.extract_strided_slice %45 {offsets = [0, 96], sizes = [8, 32], strides = [1, 1]} : vector<8x128xf32> to vector<8x32xf32>
    %51 = arith.mulf %48, %29 : vector<8x32xf32>
    %52 = arith.mulf %47, %49 : vector<8x32xf32>
    %53 = arith.addf %51, %52 : vector<8x32xf32>
    %54 = math.tanh %53 : vector<8x32xf32>
    %55 = arith.mulf %50, %54 : vector<8x32xf32>
    %56 = arith.truncf %55 : vector<8x32xf32> to vector<8x32xbf16>
    %c1 = arith.constant 1 : index
    %c0_17 = arith.constant 0 : index
    %c0_18 = arith.constant 0 : index
    %57 = vector.load %arg11[%c1, %c0_17, %c0_18] : memref<8x8x32xbf16, #tpu.memory_space<vmem>>, vector<1x8x32xbf16>
    %58 = vector.shape_cast %57 : vector<1x8x32xbf16> to vector<8x32xbf16>
    %59 = vector.shape_cast %56 : vector<8x32xbf16> to vector<1x8x32xbf16>
    tpu.vector_store %arg11[%c1, %c0_17, %c0_18], %59 {strides = array<i32>} : memref<8x8x32xbf16, #tpu.memory_space<vmem>>, vector<1x8x32xbf16>,
    %60 = vector.extract_strided_slice %9 {offsets = [2, 0, 0], sizes = [1, 8, 128], strides = [1, 1, 1]} : vector<8x8x128xf32> to vector<1x8x128xf32>
    %61 = vector.shape_cast %60 : vector<1x8x128xf32> to vector<8x128xf32>
    %62 = arith.truncf %55 : vector<8x32xf32> to vector<8x32xbf16>
    %cst_19 = arith.constant dense<0.000000e+00> : vector<8x128xf32>
    %63 = tpu.matmul %62, %1, %cst_19 {dimension_numbers = #tpu.dot_dimension_numbers<[1], [0], [0], [1], [0, 0, 1, 1], [], []>} : vector<8x32xbf16>, vector<32x128xbf16>, vector<8x128xf32> -> vector<8x128xf32>
    %64 = arith.addf %61, %63 : vector<8x128xf32>
    %65 = arith.negf %64 : vector<8x128xf32>
    %66 = math.exp %65 : vector<8x128xf32>
    %cst_20 = arith.constant 1.000000e+00 : f32
    %67 = vector.broadcast %cst_20 : f32 to vector<8x128xf32>
    %68 = arith.addf %67, %66 : vector<8x128xf32>
    %69 = arith.divf %67, %68 : vector<8x128xf32>
    %70 = math.tanh %64 : vector<8x128xf32>
    %71 = vector.extract_strided_slice %69 {offsets = [0, 0], sizes = [8, 32], strides = [1, 1]} : vector<8x128xf32> to vector<8x32xf32>
    %72 = vector.extract_strided_slice %69 {offsets = [0, 32], sizes = [8, 32], strides = [1, 1]} : vector<8x128xf32> to vector<8x32xf32>
    %73 = vector.extract_strided_slice %70 {offsets = [0, 64], sizes = [8, 32], strides = [1, 1]} : vector<8x128xf32> to vector<8x32xf32>
    %74 = vector.extract_strided_slice %69 {offsets = [0, 96], sizes = [8, 32], strides = [1, 1]} : vector<8x128xf32> to vector<8x32xf32>
    %75 = arith.mulf %72, %53 : vector<8x32xf32>
    %76 = arith.mulf %71, %73 : vector<8x32xf32>
    %77 = arith.addf %75, %76 : vector<8x32xf32>
    %78 = math.tanh %77 : vector<8x32xf32>
    %79 = arith.mulf %74, %78 : vector<8x32xf32>
    %80 = arith.truncf %79 : vector<8x32xf32> to vector<8x32xbf16>
    %c2 = arith.constant 2 : index
    %c0_21 = arith.constant 0 : index
    %c0_22 = arith.constant 0 : index
    %81 = vector.load %arg11[%c2, %c0_21, %c0_22] : memref<8x8x32xbf16, #tpu.memory_space<vmem>>, vector<1x8x32xbf16>
    %82 = vector.shape_cast %81 : vector<1x8x32xbf16> to vector<8x32xbf16>
    %83 = vector.shape_cast %80 : vector<8x32xbf16> to vector<1x8x32xbf16>
    tpu.vector_store %arg11[%c2, %c0_21, %c0_22], %83 {strides = array<i32>} : memref<8x8x32xbf16, #tpu.memory_space<vmem>>, vector<1x8x32xbf16>,
    %84 = vector.extract_strided_slice %9 {offsets = [3, 0, 0], sizes = [1, 8, 128], strides = [1, 1, 1]} : vector<8x8x128xf32> to vector<1x8x128xf32>
    %85 = vector.shape_cast %84 : vector<1x8x128xf32> to vector<8x128xf32>
    %86 = arith.truncf %79 : vector<8x32xf32> to vector<8x32xbf16>
    %cst_23 = arith.constant dense<0.000000e+00> : vector<8x128xf32>
    %87 = tpu.matmul %86, %1, %cst_23 {dimension_numbers = #tpu.dot_dimension_numbers<[1], [0], [0], [1], [0, 0, 1, 1], [], []>} : vector<8x32xbf16>, vector<32x128xbf16>, vector<8x128xf32> -> vector<8x128xf32>
    %88 = arith.addf %85, %87 : vector<8x128xf32>
    %89 = arith.negf %88 : vector<8x128xf32>
    %90 = math.exp %89 : vector<8x128xf32>
    %cst_24 = arith.constant 1.000000e+00 : f32
    %91 = vector.broadcast %cst_24 : f32 to vector<8x128xf32>
    %92 = arith.addf %91, %90 : vector<8x128xf32>
    %93 = arith.divf %91, %92 : vector<8x128xf32>
    %94 = math.tanh %88 : vector<8x128xf32>
    %95 = vector.extract_strided_slice %93 {offsets = [0, 0], sizes = [8, 32], strides = [1, 1]} : vector<8x128xf32> to vector<8x32xf32>
    %96 = vector.extract_strided_slice %93 {offsets = [0, 32], sizes = [8, 32], strides = [1, 1]} : vector<8x128xf32> to vector<8x32xf32>
    %97 = vector.extract_strided_slice %94 {offsets = [0, 64], sizes = [8, 32], strides = [1, 1]} : vector<8x128xf32> to vector<8x32xf32>
    %98 = vector.extract_strided_slice %93 {offsets = [0, 96], sizes = [8, 32], strides = [1, 1]} : vector<8x128xf32> to vector<8x32xf32>
    %99 = arith.mulf %96, %77 : vector<8x32xf32>
    %100 = arith.mulf %95, %97 : vector<8x32xf32>
    %101 = arith.addf %99, %100 : vector<8x32xf32>
    %102 = math.tanh %101 : vector<8x32xf32>
    %103 = arith.mulf %98, %102 : vector<8x32xf32>
    %104 = arith.truncf %103 : vector<8x32xf32> to vector<8x32xbf16>
    %c3 = arith.constant 3 : index
    %c0_25 = arith.constant 0 : index
    %c0_26 = arith.constant 0 : index
    %105 = vector.load %arg11[%c3, %c0_25, %c0_26] : memref<8x8x32xbf16, #tpu.memory_space<vmem>>, vector<1x8x32xbf16>
    %106 = vector.shape_cast %105 : vector<1x8x32xbf16> to vector<8x32xbf16>
    %107 = vector.shape_cast %104 : vector<8x32xbf16> to vector<1x8x32xbf16>
    tpu.vector_store %arg11[%c3, %c0_25, %c0_26], %107 {strides = array<i32>} : memref<8x8x32xbf16, #tpu.memory_space<vmem>>, vector<1x8x32xbf16>,
    %108 = vector.extract_strided_slice %9 {offsets = [4, 0, 0], sizes = [1, 8, 128], strides = [1, 1, 1]} : vector<8x8x128xf32> to vector<1x8x128xf32>
    %109 = vector.shape_cast %108 : vector<1x8x128xf32> to vector<8x128xf32>
    %110 = arith.truncf %103 : vector<8x32xf32> to vector<8x32xbf16>
    %cst_27 = arith.constant dense<0.000000e+00> : vector<8x128xf32>
    %111 = tpu.matmul %110, %1, %cst_27 {dimension_numbers = #tpu.dot_dimension_numbers<[1], [0], [0], [1], [0, 0, 1, 1], [], []>} : vector<8x32xbf16>, vector<32x128xbf16>, vector<8x128xf32> -> vector<8x128xf32>
    %112 = arith.addf %109, %111 : vector<8x128xf32>
    %113 = arith.negf %112 : vector<8x128xf32>
    %114 = math.exp %113 : vector<8x128xf32>
    %cst_28 = arith.constant 1.000000e+00 : f32
    %115 = vector.broadcast %cst_28 : f32 to vector<8x128xf32>
    %116 = arith.addf %115, %114 : vector<8x128xf32>
    %117 = arith.divf %115, %116 : vector<8x128xf32>
    %118 = math.tanh %112 : vector<8x128xf32>
    %119 = vector.extract_strided_slice %117 {offsets = [0, 0], sizes = [8, 32], strides = [1, 1]} : vector<8x128xf32> to vector<8x32xf32>
    %120 = vector.extract_strided_slice %117 {offsets = [0, 32], sizes = [8, 32], strides = [1, 1]} : vector<8x128xf32> to vector<8x32xf32>
    %121 = vector.extract_strided_slice %118 {offsets = [0, 64], sizes = [8, 32], strides = [1, 1]} : vector<8x128xf32> to vector<8x32xf32>
    %122 = vector.extract_strided_slice %117 {offsets = [0, 96], sizes = [8, 32], strides = [1, 1]} : vector<8x128xf32> to vector<8x32xf32>
    %123 = arith.mulf %120, %101 : vector<8x32xf32>
    %124 = arith.mulf %119, %121 : vector<8x32xf32>
    %125 = arith.addf %123, %124 : vector<8x32xf32>
    %126 = math.tanh %125 : vector<8x32xf32>
    %127 = arith.mulf %122, %126 : vector<8x32xf32>
    %128 = arith.truncf %127 : vector<8x32xf32> to vector<8x32xbf16>
    %c4 = arith.constant 4 : index
    %c0_29 = arith.constant 0 : index
    %c0_30 = arith.constant 0 : index
    %129 = vector.load %arg11[%c4, %c0_29, %c0_30] : memref<8x8x32xbf16, #tpu.memory_space<vmem>>, vector<1x8x32xbf16>
    %130 = vector.shape_cast %129 : vector<1x8x32xbf16> to vector<8x32xbf16>
    %131 = vector.shape_cast %128 : vector<8x32xbf16> to vector<1x8x32xbf16>
    tpu.vector_store %arg11[%c4, %c0_29, %c0_30], %131 {strides = array<i32>} : memref<8x8x32xbf16, #tpu.memory_space<vmem>>, vector<1x8x32xbf16>,
    %132 = vector.extract_strided_slice %9 {offsets = [5, 0, 0], sizes = [1, 8, 128], strides = [1, 1, 1]} : vector<8x8x128xf32> to vector<1x8x128xf32>
    %133 = vector.shape_cast %132 : vector<1x8x128xf32> to vector<8x128xf32>
    %134 = arith.truncf %127 : vector<8x32xf32> to vector<8x32xbf16>
    %cst_31 = arith.constant dense<0.000000e+00> : vector<8x128xf32>
    %135 = tpu.matmul %134, %1, %cst_31 {dimension_numbers = #tpu.dot_dimension_numbers<[1], [0], [0], [1], [0, 0, 1, 1], [], []>} : vector<8x32xbf16>, vector<32x128xbf16>, vector<8x128xf32> -> vector<8x128xf32>
    %136 = arith.addf %133, %135 : vector<8x128xf32>
    %137 = arith.negf %136 : vector<8x128xf32>
    %138 = math.exp %137 : vector<8x128xf32>
    %cst_32 = arith.constant 1.000000e+00 : f32
    %139 = vector.broadcast %cst_32 : f32 to vector<8x128xf32>
    %140 = arith.addf %139, %138 : vector<8x128xf32>
    %141 = arith.divf %139, %140 : vector<8x128xf32>
    %142 = math.tanh %136 : vector<8x128xf32>
    %143 = vector.extract_strided_slice %141 {offsets = [0, 0], sizes = [8, 32], strides = [1, 1]} : vector<8x128xf32> to vector<8x32xf32>
    %144 = vector.extract_strided_slice %141 {offsets = [0, 32], sizes = [8, 32], strides = [1, 1]} : vector<8x128xf32> to vector<8x32xf32>
    %145 = vector.extract_strided_slice %142 {offsets = [0, 64], sizes = [8, 32], strides = [1, 1]} : vector<8x128xf32> to vector<8x32xf32>
    %146 = vector.extract_strided_slice %141 {offsets = [0, 96], sizes = [8, 32], strides = [1, 1]} : vector<8x128xf32> to vector<8x32xf32>
    %147 = arith.mulf %144, %125 : vector<8x32xf32>
    %148 = arith.mulf %143, %145 : vector<8x32xf32>
    %149 = arith.addf %147, %148 : vector<8x32xf32>
    %150 = math.tanh %149 : vector<8x32xf32>
    %151 = arith.mulf %146, %150 : vector<8x32xf32>
    %152 = arith.truncf %151 : vector<8x32xf32> to vector<8x32xbf16>
    %c5 = arith.constant 5 : index
    %c0_33 = arith.constant 0 : index
    %c0_34 = arith.constant 0 : index
    %153 = vector.load %arg11[%c5, %c0_33, %c0_34] : memref<8x8x32xbf16, #tpu.memory_space<vmem>>, vector<1x8x32xbf16>
    %154 = vector.shape_cast %153 : vector<1x8x32xbf16> to vector<8x32xbf16>
    %155 = vector.shape_cast %152 : vector<8x32xbf16> to vector<1x8x32xbf16>
    tpu.vector_store %arg11[%c5, %c0_33, %c0_34], %155 {strides = array<i32>} : memref<8x8x32xbf16, #tpu.memory_space<vmem>>, vector<1x8x32xbf16>,
    %156 = vector.extract_strided_slice %9 {offsets = [6, 0, 0], sizes = [1, 8, 128], strides = [1, 1, 1]} : vector<8x8x128xf32> to vector<1x8x128xf32>
    %157 = vector.shape_cast %156 : vector<1x8x128xf32> to vector<8x128xf32>
    %158 = arith.truncf %151 : vector<8x32xf32> to vector<8x32xbf16>
    %cst_35 = arith.constant dense<0.000000e+00> : vector<8x128xf32>
    %159 = tpu.matmul %158, %1, %cst_35 {dimension_numbers = #tpu.dot_dimension_numbers<[1], [0], [0], [1], [0, 0, 1, 1], [], []>} : vector<8x32xbf16>, vector<32x128xbf16>, vector<8x128xf32> -> vector<8x128xf32>
    %160 = arith.addf %157, %159 : vector<8x128xf32>
    %161 = arith.negf %160 : vector<8x128xf32>
    %162 = math.exp %161 : vector<8x128xf32>
    %cst_36 = arith.constant 1.000000e+00 : f32
    %163 = vector.broadcast %cst_36 : f32 to vector<8x128xf32>
    %164 = arith.addf %163, %162 : vector<8x128xf32>
    %165 = arith.divf %163, %164 : vector<8x128xf32>
    %166 = math.tanh %160 : vector<8x128xf32>
    %167 = vector.extract_strided_slice %165 {offsets = [0, 0], sizes = [8, 32], strides = [1, 1]} : vector<8x128xf32> to vector<8x32xf32>
    %168 = vector.extract_strided_slice %165 {offsets = [0, 32], sizes = [8, 32], strides = [1, 1]} : vector<8x128xf32> to vector<8x32xf32>
    %169 = vector.extract_strided_slice %166 {offsets = [0, 64], sizes = [8, 32], strides = [1, 1]} : vector<8x128xf32> to vector<8x32xf32>
    %170 = vector.extract_strided_slice %165 {offsets = [0, 96], sizes = [8, 32], strides = [1, 1]} : vector<8x128xf32> to vector<8x32xf32>
    %171 = arith.mulf %168, %149 : vector<8x32xf32>
    %172 = arith.mulf %167, %169 : vector<8x32xf32>
    %173 = arith.addf %171, %172 : vector<8x32xf32>
    %174 = math.tanh %173 : vector<8x32xf32>
    %175 = arith.mulf %170, %174 : vector<8x32xf32>
    %176 = arith.truncf %175 : vector<8x32xf32> to vector<8x32xbf16>
    %c6 = arith.constant 6 : index
    %c0_37 = arith.constant 0 : index
    %c0_38 = arith.constant 0 : index
    %177 = vector.load %arg11[%c6, %c0_37, %c0_38] : memref<8x8x32xbf16, #tpu.memory_space<vmem>>, vector<1x8x32xbf16>
    %178 = vector.shape_cast %177 : vector<1x8x32xbf16> to vector<8x32xbf16>
    %179 = vector.shape_cast %176 : vector<8x32xbf16> to vector<1x8x32xbf16>
    tpu.vector_store %arg11[%c6, %c0_37, %c0_38], %179 {strides = array<i32>} : memref<8x8x32xbf16, #tpu.memory_space<vmem>>, vector<1x8x32xbf16>,
    %180 = vector.extract_strided_slice %9 {offsets = [7, 0, 0], sizes = [1, 8, 128], strides = [1, 1, 1]} : vector<8x8x128xf32> to vector<1x8x128xf32>
    %181 = vector.shape_cast %180 : vector<1x8x128xf32> to vector<8x128xf32>
    %182 = arith.truncf %175 : vector<8x32xf32> to vector<8x32xbf16>
    %cst_39 = arith.constant dense<0.000000e+00> : vector<8x128xf32>
    %183 = tpu.matmul %182, %1, %cst_39 {dimension_numbers = #tpu.dot_dimension_numbers<[1], [0], [0], [1], [0, 0, 1, 1], [], []>} : vector<8x32xbf16>, vector<32x128xbf16>, vector<8x128xf32> -> vector<8x128xf32>
    %184 = arith.addf %181, %183 : vector<8x128xf32>
    %185 = arith.negf %184 : vector<8x128xf32>
    %186 = math.exp %185 : vector<8x128xf32>
    %cst_40 = arith.constant 1.000000e+00 : f32
    %187 = vector.broadcast %cst_40 : f32 to vector<8x128xf32>
    %188 = arith.addf %187, %186 : vector<8x128xf32>
    %189 = arith.divf %187, %188 : vector<8x128xf32>
    %190 = math.tanh %184 : vector<8x128xf32>
    %191 = vector.extract_strided_slice %189 {offsets = [0, 0], sizes = [8, 32], strides = [1, 1]} : vector<8x128xf32> to vector<8x32xf32>
    %192 = vector.extract_strided_slice %189 {offsets = [0, 32], sizes = [8, 32], strides = [1, 1]} : vector<8x128xf32> to vector<8x32xf32>
    %193 = vector.extract_strided_slice %190 {offsets = [0, 64], sizes = [8, 32], strides = [1, 1]} : vector<8x128xf32> to vector<8x32xf32>
    %194 = vector.extract_strided_slice %189 {offsets = [0, 96], sizes = [8, 32], strides = [1, 1]} : vector<8x128xf32> to vector<8x32xf32>
    %195 = arith.mulf %192, %173 : vector<8x32xf32>
    %196 = arith.mulf %191, %193 : vector<8x32xf32>
    %197 = arith.addf %195, %196 : vector<8x32xf32>
    %198 = math.tanh %197 : vector<8x32xf32>
    %199 = arith.mulf %194, %198 : vector<8x32xf32>
    %200 = arith.truncf %199 : vector<8x32xf32> to vector<8x32xbf16>
    %c7 = arith.constant 7 : index
    %c0_41 = arith.constant 0 : index
    %c0_42 = arith.constant 0 : index
    %201 = vector.load %arg11[%c7, %c0_41, %c0_42] : memref<8x8x32xbf16, #tpu.memory_space<vmem>>, vector<1x8x32xbf16>
    %202 = vector.shape_cast %201 : vector<1x8x32xbf16> to vector<8x32xbf16>
    %203 = vector.shape_cast %200 : vector<8x32xbf16> to vector<1x8x32xbf16>
    tpu.vector_store %arg11[%c7, %c0_41, %c0_42], %203 {strides = array<i32>} : memref<8x8x32xbf16, #tpu.memory_space<vmem>>, vector<1x8x32xbf16>,
    %c0_43 = arith.constant 0 : index
    %c0_44 = arith.constant 0 : index
    %204 = vector.load %arg5[%c0_43, %c0_44] : memref<32x128xbf16, #tpu.memory_space<vmem>>, vector<32x128xbf16>
    %c0_45 = arith.constant 0 : index
    %c0_46 = arith.constant 0 : index
    %205 = vector.load %arg6[%c0_45, %c0_46] : memref<32x128xbf16, #tpu.memory_space<vmem>>, vector<32x128xbf16>
    %c0_47 = arith.constant 0 : index
    %c0_48 = arith.constant 0 : index
    %206 = vector.load %arg7[%c0_47, %c0_48] : memref<1x128xf32, #tpu.memory_space<vmem>>, vector<1x128xf32>
    %c0_49 = arith.constant 0 : index
    %c0_50 = arith.constant 0 : index
    %c0_51 = arith.constant 0 : index
    %207 = vector.load %arg11[%c0_49, %c0_50, %c0_51] : memref<8x8x32xbf16, #tpu.memory_space<vmem>>, vector<8x8x32xbf16>
    %208 = vector.shape_cast %207 : vector<8x8x32xbf16> to vector<64x32xbf16>
    %cst_52 = arith.constant dense<0.000000e+00> : vector<64x128xf32>
    %209 = tpu.matmul %208, %204, %cst_52 {dimension_numbers = #tpu.dot_dimension_numbers<[1], [0], [0], [1], [0, 0, 1, 1], [], []>} : vector<64x32xbf16>, vector<32x128xbf16>, vector<64x128xf32> -> vector<64x128xf32>
    %210 = vector.broadcast %206 : vector<1x128xf32> to vector<64x128xf32>
    %211 = arith.addf %209, %210 : vector<64x128xf32>
    %212 = vector.shape_cast %211 : vector<64x128xf32> to vector<8x8x128xf32>
    %cst_53 = arith.constant 0.000000e+00 : f32
    %213 = vector.broadcast %cst_53 : f32 to vector<8x32xf32>
    %cst_54 = arith.constant 0.000000e+00 : f32
    %214 = vector.broadcast %cst_54 : f32 to vector<8x32xf32>
    %215 = vector.extract_strided_slice %212 {offsets = [0, 0, 0], sizes = [1, 8, 128], strides = [1, 1, 1]} : vector<8x8x128xf32> to vector<1x8x128xf32>
    %216 = vector.shape_cast %215 : vector<1x8x128xf32> to vector<8x128xf32>
    %217 = arith.truncf %213 : vector<8x32xf32> to vector<8x32xbf16>
    %cst_55 = arith.constant dense<0.000000e+00> : vector<8x128xf32>
    %218 = tpu.matmul %217, %205, %cst_55 {dimension_numbers = #tpu.dot_dimension_numbers<[1], [0], [0], [1], [0, 0, 1, 1], [], []>} : vector<8x32xbf16>, vector<32x128xbf16>, vector<8x128xf32> -> vector<8x128xf32>
    %219 = arith.addf %216, %218 : vector<8x128xf32>
    %220 = arith.negf %219 : vector<8x128xf32>
    %221 = math.exp %220 : vector<8x128xf32>
    %cst_56 = arith.constant 1.000000e+00 : f32
    %222 = vector.broadcast %cst_56 : f32 to vector<8x128xf32>
    %223 = arith.addf %222, %221 : vector<8x128xf32>
    %224 = arith.divf %222, %223 : vector<8x128xf32>
    %225 = math.tanh %219 : vector<8x128xf32>
    %226 = vector.extract_strided_slice %224 {offsets = [0, 0], sizes = [8, 32], strides = [1, 1]} : vector<8x128xf32> to vector<8x32xf32>
    %227 = vector.extract_strided_slice %224 {offsets = [0, 32], sizes = [8, 32], strides = [1, 1]} : vector<8x128xf32> to vector<8x32xf32>
    %228 = vector.extract_strided_slice %225 {offsets = [0, 64], sizes = [8, 32], strides = [1, 1]} : vector<8x128xf32> to vector<8x32xf32>
    %229 = vector.extract_strided_slice %224 {offsets = [0, 96], sizes = [8, 32], strides = [1, 1]} : vector<8x128xf32> to vector<8x32xf32>
    %230 = arith.mulf %227, %214 : vector<8x32xf32>
    %231 = arith.mulf %226, %228 : vector<8x32xf32>
    %232 = arith.addf %230, %231 : vector<8x32xf32>
    %233 = math.tanh %232 : vector<8x32xf32>
    %234 = arith.mulf %229, %233 : vector<8x32xf32>
    %235 = vector.extract_strided_slice %212 {offsets = [1, 0, 0], sizes = [1, 8, 128], strides = [1, 1, 1]} : vector<8x8x128xf32> to vector<1x8x128xf32>
    %236 = vector.shape_cast %235 : vector<1x8x128xf32> to vector<8x128xf32>
    %237 = arith.truncf %234 : vector<8x32xf32> to vector<8x32xbf16>
    %cst_57 = arith.constant dense<0.000000e+00> : vector<8x128xf32>
    %238 = tpu.matmul %237, %205, %cst_57 {dimension_numbers = #tpu.dot_dimension_numbers<[1], [0], [0], [1], [0, 0, 1, 1], [], []>} : vector<8x32xbf16>, vector<32x128xbf16>, vector<8x128xf32> -> vector<8x128xf32>
    %239 = arith.addf %236, %238 : vector<8x128xf32>
    %240 = arith.negf %239 : vector<8x128xf32>
    %241 = math.exp %240 : vector<8x128xf32>
    %cst_58 = arith.constant 1.000000e+00 : f32
    %242 = vector.broadcast %cst_58 : f32 to vector<8x128xf32>
    %243 = arith.addf %242, %241 : vector<8x128xf32>
    %244 = arith.divf %242, %243 : vector<8x128xf32>
    %245 = math.tanh %239 : vector<8x128xf32>
    %246 = vector.extract_strided_slice %244 {offsets = [0, 0], sizes = [8, 32], strides = [1, 1]} : vector<8x128xf32> to vector<8x32xf32>
    %247 = vector.extract_strided_slice %244 {offsets = [0, 32], sizes = [8, 32], strides = [1, 1]} : vector<8x128xf32> to vector<8x32xf32>
    %248 = vector.extract_strided_slice %245 {offsets = [0, 64], sizes = [8, 32], strides = [1, 1]} : vector<8x128xf32> to vector<8x32xf32>
    %249 = vector.extract_strided_slice %244 {offsets = [0, 96], sizes = [8, 32], strides = [1, 1]} : vector<8x128xf32> to vector<8x32xf32>
    %250 = arith.mulf %247, %232 : vector<8x32xf32>
    %251 = arith.mulf %246, %248 : vector<8x32xf32>
    %252 = arith.addf %250, %251 : vector<8x32xf32>
    %253 = math.tanh %252 : vector<8x32xf32>
    %254 = arith.mulf %249, %253 : vector<8x32xf32>
    %255 = vector.extract_strided_slice %212 {offsets = [2, 0, 0], sizes = [1, 8, 128], strides = [1, 1, 1]} : vector<8x8x128xf32> to vector<1x8x128xf32>
    %256 = vector.shape_cast %255 : vector<1x8x128xf32> to vector<8x128xf32>
    %257 = arith.truncf %254 : vector<8x32xf32> to vector<8x32xbf16>
    %cst_59 = arith.constant dense<0.000000e+00> : vector<8x128xf32>
    %258 = tpu.matmul %257, %205, %cst_59 {dimension_numbers = #tpu.dot_dimension_numbers<[1], [0], [0], [1], [0, 0, 1, 1], [], []>} : vector<8x32xbf16>, vector<32x128xbf16>, vector<8x128xf32> -> vector<8x128xf32>
    %259 = arith.addf %256, %258 : vector<8x128xf32>
    %260 = arith.negf %259 : vector<8x128xf32>
    %261 = math.exp %260 : vector<8x128xf32>
    %cst_60 = arith.constant 1.000000e+00 : f32
    %262 = vector.broadcast %cst_60 : f32 to vector<8x128xf32>
    %263 = arith.addf %262, %261 : vector<8x128xf32>
    %264 = arith.divf %262, %263 : vector<8x128xf32>
    %265 = math.tanh %259 : vector<8x128xf32>
    %266 = vector.extract_strided_slice %264 {offsets = [0, 0], sizes = [8, 32], strides = [1, 1]} : vector<8x128xf32> to vector<8x32xf32>
    %267 = vector.extract_strided_slice %264 {offsets = [0, 32], sizes = [8, 32], strides = [1, 1]} : vector<8x128xf32> to vector<8x32xf32>
    %268 = vector.extract_strided_slice %265 {offsets = [0, 64], sizes = [8, 32], strides = [1, 1]} : vector<8x128xf32> to vector<8x32xf32>
    %269 = vector.extract_strided_slice %264 {offsets = [0, 96], sizes = [8, 32], strides = [1, 1]} : vector<8x128xf32> to vector<8x32xf32>
    %270 = arith.mulf %267, %252 : vector<8x32xf32>
    %271 = arith.mulf %266, %268 : vector<8x32xf32>
    %272 = arith.addf %270, %271 : vector<8x32xf32>
    %273 = math.tanh %272 : vector<8x32xf32>
    %274 = arith.mulf %269, %273 : vector<8x32xf32>
    %275 = vector.extract_strided_slice %212 {offsets = [3, 0, 0], sizes = [1, 8, 128], strides = [1, 1, 1]} : vector<8x8x128xf32> to vector<1x8x128xf32>
    %276 = vector.shape_cast %275 : vector<1x8x128xf32> to vector<8x128xf32>
    %277 = arith.truncf %274 : vector<8x32xf32> to vector<8x32xbf16>
    %cst_61 = arith.constant dense<0.000000e+00> : vector<8x128xf32>
    %278 = tpu.matmul %277, %205, %cst_61 {dimension_numbers = #tpu.dot_dimension_numbers<[1], [0], [0], [1], [0, 0, 1, 1], [], []>} : vector<8x32xbf16>, vector<32x128xbf16>, vector<8x128xf32> -> vector<8x128xf32>
    %279 = arith.addf %276, %278 : vector<8x128xf32>
    %280 = arith.negf %279 : vector<8x128xf32>
    %281 = math.exp %280 : vector<8x128xf32>
    %cst_62 = arith.constant 1.000000e+00 : f32
    %282 = vector.broadcast %cst_62 : f32 to vector<8x128xf32>
    %283 = arith.addf %282, %281 : vector<8x128xf32>
    %284 = arith.divf %282, %283 : vector<8x128xf32>
    %285 = math.tanh %279 : vector<8x128xf32>
    %286 = vector.extract_strided_slice %284 {offsets = [0, 0], sizes = [8, 32], strides = [1, 1]} : vector<8x128xf32> to vector<8x32xf32>
    %287 = vector.extract_strided_slice %284 {offsets = [0, 32], sizes = [8, 32], strides = [1, 1]} : vector<8x128xf32> to vector<8x32xf32>
    %288 = vector.extract_strided_slice %285 {offsets = [0, 64], sizes = [8, 32], strides = [1, 1]} : vector<8x128xf32> to vector<8x32xf32>
    %289 = vector.extract_strided_slice %284 {offsets = [0, 96], sizes = [8, 32], strides = [1, 1]} : vector<8x128xf32> to vector<8x32xf32>
    %290 = arith.mulf %287, %272 : vector<8x32xf32>
    %291 = arith.mulf %286, %288 : vector<8x32xf32>
    %292 = arith.addf %290, %291 : vector<8x32xf32>
    %293 = math.tanh %292 : vector<8x32xf32>
    %294 = arith.mulf %289, %293 : vector<8x32xf32>
    %295 = vector.extract_strided_slice %212 {offsets = [4, 0, 0], sizes = [1, 8, 128], strides = [1, 1, 1]} : vector<8x8x128xf32> to vector<1x8x128xf32>
    %296 = vector.shape_cast %295 : vector<1x8x128xf32> to vector<8x128xf32>
    %297 = arith.truncf %294 : vector<8x32xf32> to vector<8x32xbf16>
    %cst_63 = arith.constant dense<0.000000e+00> : vector<8x128xf32>
    %298 = tpu.matmul %297, %205, %cst_63 {dimension_numbers = #tpu.dot_dimension_numbers<[1], [0], [0], [1], [0, 0, 1, 1], [], []>} : vector<8x32xbf16>, vector<32x128xbf16>, vector<8x128xf32> -> vector<8x128xf32>
    %299 = arith.addf %296, %298 : vector<8x128xf32>
    %300 = arith.negf %299 : vector<8x128xf32>
    %301 = math.exp %300 : vector<8x128xf32>
    %cst_64 = arith.constant 1.000000e+00 : f32
    %302 = vector.broadcast %cst_64 : f32 to vector<8x128xf32>
    %303 = arith.addf %302, %301 : vector<8x128xf32>
    %304 = arith.divf %302, %303 : vector<8x128xf32>
    %305 = math.tanh %299 : vector<8x128xf32>
    %306 = vector.extract_strided_slice %304 {offsets = [0, 0], sizes = [8, 32], strides = [1, 1]} : vector<8x128xf32> to vector<8x32xf32>
    %307 = vector.extract_strided_slice %304 {offsets = [0, 32], sizes = [8, 32], strides = [1, 1]} : vector<8x128xf32> to vector<8x32xf32>
    %308 = vector.extract_strided_slice %305 {offsets = [0, 64], sizes = [8, 32], strides = [1, 1]} : vector<8x128xf32> to vector<8x32xf32>
    %309 = vector.extract_strided_slice %304 {offsets = [0, 96], sizes = [8, 32], strides = [1, 1]} : vector<8x128xf32> to vector<8x32xf32>
    %310 = arith.mulf %307, %292 : vector<8x32xf32>
    %311 = arith.mulf %306, %308 : vector<8x32xf32>
    %312 = arith.addf %310, %311 : vector<8x32xf32>
    %313 = math.tanh %312 : vector<8x32xf32>
    %314 = arith.mulf %309, %313 : vector<8x32xf32>
    %315 = vector.extract_strided_slice %212 {offsets = [5, 0, 0], sizes = [1, 8, 128], strides = [1, 1, 1]} : vector<8x8x128xf32> to vector<1x8x128xf32>
    %316 = vector.shape_cast %315 : vector<1x8x128xf32> to vector<8x128xf32>
    %317 = arith.truncf %314 : vector<8x32xf32> to vector<8x32xbf16>
    %cst_65 = arith.constant dense<0.000000e+00> : vector<8x128xf32>
    %318 = tpu.matmul %317, %205, %cst_65 {dimension_numbers = #tpu.dot_dimension_numbers<[1], [0], [0], [1], [0, 0, 1, 1], [], []>} : vector<8x32xbf16>, vector<32x128xbf16>, vector<8x128xf32> -> vector<8x128xf32>
    %319 = arith.addf %316, %318 : vector<8x128xf32>
    %320 = arith.negf %319 : vector<8x128xf32>
    %321 = math.exp %320 : vector<8x128xf32>
    %cst_66 = arith.constant 1.000000e+00 : f32
    %322 = vector.broadcast %cst_66 : f32 to vector<8x128xf32>
    %323 = arith.addf %322, %321 : vector<8x128xf32>
    %324 = arith.divf %322, %323 : vector<8x128xf32>
    %325 = math.tanh %319 : vector<8x128xf32>
    %326 = vector.extract_strided_slice %324 {offsets = [0, 0], sizes = [8, 32], strides = [1, 1]} : vector<8x128xf32> to vector<8x32xf32>
    %327 = vector.extract_strided_slice %324 {offsets = [0, 32], sizes = [8, 32], strides = [1, 1]} : vector<8x128xf32> to vector<8x32xf32>
    %328 = vector.extract_strided_slice %325 {offsets = [0, 64], sizes = [8, 32], strides = [1, 1]} : vector<8x128xf32> to vector<8x32xf32>
    %329 = vector.extract_strided_slice %324 {offsets = [0, 96], sizes = [8, 32], strides = [1, 1]} : vector<8x128xf32> to vector<8x32xf32>
    %330 = arith.mulf %327, %312 : vector<8x32xf32>
    %331 = arith.mulf %326, %328 : vector<8x32xf32>
    %332 = arith.addf %330, %331 : vector<8x32xf32>
    %333 = math.tanh %332 : vector<8x32xf32>
    %334 = arith.mulf %329, %333 : vector<8x32xf32>
    %335 = vector.extract_strided_slice %212 {offsets = [6, 0, 0], sizes = [1, 8, 128], strides = [1, 1, 1]} : vector<8x8x128xf32> to vector<1x8x128xf32>
    %336 = vector.shape_cast %335 : vector<1x8x128xf32> to vector<8x128xf32>
    %337 = arith.truncf %334 : vector<8x32xf32> to vector<8x32xbf16>
    %cst_67 = arith.constant dense<0.000000e+00> : vector<8x128xf32>
    %338 = tpu.matmul %337, %205, %cst_67 {dimension_numbers = #tpu.dot_dimension_numbers<[1], [0], [0], [1], [0, 0, 1, 1], [], []>} : vector<8x32xbf16>, vector<32x128xbf16>, vector<8x128xf32> -> vector<8x128xf32>
    %339 = arith.addf %336, %338 : vector<8x128xf32>
    %340 = arith.negf %339 : vector<8x128xf32>
    %341 = math.exp %340 : vector<8x128xf32>
    %cst_68 = arith.constant 1.000000e+00 : f32
    %342 = vector.broadcast %cst_68 : f32 to vector<8x128xf32>
    %343 = arith.addf %342, %341 : vector<8x128xf32>
    %344 = arith.divf %342, %343 : vector<8x128xf32>
    %345 = math.tanh %339 : vector<8x128xf32>
    %346 = vector.extract_strided_slice %344 {offsets = [0, 0], sizes = [8, 32], strides = [1, 1]} : vector<8x128xf32> to vector<8x32xf32>
    %347 = vector.extract_strided_slice %344 {offsets = [0, 32], sizes = [8, 32], strides = [1, 1]} : vector<8x128xf32> to vector<8x32xf32>
    %348 = vector.extract_strided_slice %345 {offsets = [0, 64], sizes = [8, 32], strides = [1, 1]} : vector<8x128xf32> to vector<8x32xf32>
    %349 = vector.extract_strided_slice %344 {offsets = [0, 96], sizes = [8, 32], strides = [1, 1]} : vector<8x128xf32> to vector<8x32xf32>
    %350 = arith.mulf %347, %332 : vector<8x32xf32>
    %351 = arith.mulf %346, %348 : vector<8x32xf32>
    %352 = arith.addf %350, %351 : vector<8x32xf32>
    %353 = math.tanh %352 : vector<8x32xf32>
    %354 = arith.mulf %349, %353 : vector<8x32xf32>
    %355 = vector.extract_strided_slice %212 {offsets = [7, 0, 0], sizes = [1, 8, 128], strides = [1, 1, 1]} : vector<8x8x128xf32> to vector<1x8x128xf32>
    %356 = vector.shape_cast %355 : vector<1x8x128xf32> to vector<8x128xf32>
    %357 = arith.truncf %354 : vector<8x32xf32> to vector<8x32xbf16>
    %cst_69 = arith.constant dense<0.000000e+00> : vector<8x128xf32>
    %358 = tpu.matmul %357, %205, %cst_69 {dimension_numbers = #tpu.dot_dimension_numbers<[1], [0], [0], [1], [0, 0, 1, 1], [], []>} : vector<8x32xbf16>, vector<32x128xbf16>, vector<8x128xf32> -> vector<8x128xf32>
    %359 = arith.addf %356, %358 : vector<8x128xf32>
    %360 = arith.negf %359 : vector<8x128xf32>
    %361 = math.exp %360 : vector<8x128xf32>
    %cst_70 = arith.constant 1.000000e+00 : f32
    %362 = vector.broadcast %cst_70 : f32 to vector<8x128xf32>
    %363 = arith.addf %362, %361 : vector<8x128xf32>
    %364 = arith.divf %362, %363 : vector<8x128xf32>
    %365 = math.tanh %359 : vector<8x128xf32>
    %366 = vector.extract_strided_slice %364 {offsets = [0, 0], sizes = [8, 32], strides = [1, 1]} : vector<8x128xf32> to vector<8x32xf32>
    %367 = vector.extract_strided_slice %364 {offsets = [0, 32], sizes = [8, 32], strides = [1, 1]} : vector<8x128xf32> to vector<8x32xf32>
    %368 = vector.extract_strided_slice %365 {offsets = [0, 64], sizes = [8, 32], strides = [1, 1]} : vector<8x128xf32> to vector<8x32xf32>
    %369 = vector.extract_strided_slice %364 {offsets = [0, 96], sizes = [8, 32], strides = [1, 1]} : vector<8x128xf32> to vector<8x32xf32>
    %370 = arith.mulf %367, %352 : vector<8x32xf32>
    %371 = arith.mulf %366, %368 : vector<8x32xf32>
    %372 = arith.addf %370, %371 : vector<8x32xf32>
    %373 = math.tanh %372 : vector<8x32xf32>
    %374 = arith.mulf %369, %373 : vector<8x32xf32>
    %375 = arith.truncf %374 : vector<8x32xf32> to vector<8x32xbf16>
    %c0_71 = arith.constant 0 : index
    %c0_72 = arith.constant 0 : index
    %376 = vector.load %arg8[%c0_71, %c0_72] : memref<32x16xbf16, #tpu.memory_space<vmem>>, vector<32x16xbf16>
    %cst_73 = arith.constant dense<0.000000e+00> : vector<8x16xf32>
    %377 = tpu.matmul %375, %376, %cst_73 {dimension_numbers = #tpu.dot_dimension_numbers<[1], [0], [0], [1], [0, 0, 1, 1], [], []>} : vector<8x32xbf16>, vector<32x16xbf16>, vector<8x16xf32> -> vector<8x16xf32>
    %c0_74 = arith.constant 0 : index
    %c0_75 = arith.constant 0 : index
    %378 = vector.load %arg9[%c0_74, %c0_75] : memref<1x16xf32, #tpu.memory_space<vmem>>, vector<1x16xf32>
    %379 = vector.broadcast %378 : vector<1x16xf32> to vector<8x16xf32>
    %380 = arith.addf %377, %379 : vector<8x16xf32>
    %381 = arith.negf %380 : vector<8x16xf32>
    %382 = math.exp %381 : vector<8x16xf32>
    %cst_76 = arith.constant 1.000000e+00 : f32
    %383 = vector.broadcast %cst_76 : f32 to vector<8x16xf32>
    %384 = arith.addf %383, %382 : vector<8x16xf32>
    %385 = arith.divf %383, %384 : vector<8x16xf32>
    %c0_77 = arith.constant 0 : index
    %c0_78 = arith.constant 0 : index
    %386 = vector.load %arg10[%c0_77, %c0_78] : memref<8x16xf32, #tpu.memory_space<vmem>>, vector<8x16xf32>
    tpu.vector_store %arg10[%c0_77, %c0_78], %385 {strides = array<i32>} : memref<8x16xf32, #tpu.memory_space<vmem>>, vector<8x16xf32>,
    return
  }
  func.func @transform_0(%arg0: i32) -> (i32, i32, i32) {
    %c0_i32 = arith.constant 0 : i32
    %c0_i32_0 = arith.constant 0 : i32
    %c0_i32_1 = arith.constant 0 : i32
    return %c0_i32, %arg0, %c0_i32_0 : i32, i32, i32
  }
  func.func @transform_1(%arg0: i32) -> (i32, i32) {
    %c0_i32 = arith.constant 0 : i32
    %c0_i32_0 = arith.constant 0 : i32
    %c0_i32_1 = arith.constant 0 : i32
    return %c0_i32, %c0_i32_0 : i32, i32
  }
  func.func @transform_2(%arg0: i32) -> (i32, i32) {
    %c0_i32 = arith.constant 0 : i32
    %c0_i32_0 = arith.constant 0 : i32
    %c0_i32_1 = arith.constant 0 : i32
    return %c0_i32, %c0_i32_0 : i32, i32
  }
  func.func @transform_3(%arg0: i32) -> (i32, i32) {
    %c0_i32 = arith.constant 0 : i32
    %c0_i32_0 = arith.constant 0 : i32
    %c0_i32_1 = arith.constant 0 : i32
    return %c0_i32, %c0_i32_0 : i32, i32
  }
  func.func @transform_4(%arg0: i32) -> (i32, i32) {
    %c0_i32 = arith.constant 0 : i32
    %c0_i32_0 = arith.constant 0 : i32
    %c0_i32_1 = arith.constant 0 : i32
    return %c0_i32, %c0_i32_0 : i32, i32
  }
  func.func @transform_5(%arg0: i32) -> (i32, i32) {
    %c0_i32 = arith.constant 0 : i32
    %c0_i32_0 = arith.constant 0 : i32
    %c0_i32_1 = arith.constant 0 : i32
    return %c0_i32, %c0_i32_0 : i32, i32
  }
  func.func @transform_6(%arg0: i32) -> (i32, i32) {
    %c0_i32 = arith.constant 0 : i32
    %c0_i32_0 = arith.constant 0 : i32
    %c0_i32_1 = arith.constant 0 : i32
    return %c0_i32, %c0_i32_0 : i32, i32
  }
  func.func @transform_7(%arg0: i32) -> (i32, i32) {
    %c0_i32 = arith.constant 0 : i32
    %c0_i32_0 = arith.constant 0 : i32
    %c0_i32_1 = arith.constant 0 : i32
    return %c0_i32, %c0_i32_0 : i32, i32
  }
  func.func @transform_8(%arg0: i32) -> (i32, i32) {
    %c0_i32 = arith.constant 0 : i32
    %c0_i32_0 = arith.constant 0 : i32
    %c0_i32_1 = arith.constant 0 : i32
    return %c0_i32, %c0_i32_0 : i32, i32
  }
  func.func @transform_9(%arg0: i32) -> (i32, i32) {
    %c0_i32 = arith.constant 0 : i32
    %c0_i32_0 = arith.constant 0 : i32
    return %arg0, %c0_i32 : i32, i32
  }
}

</mosaic_0001>

<llo_original>
// kernel: tpu_custom_call.1
$region0: #{tpu_custom_call.1}
  #allocation0 [shape = 'u32[]', space=smem, size = 0x4, offset = 0x4, fixed_abs, tag = 'smem constant byte address 0x4 - core index']
  #allocation1 [shape = 'u32[144,128]{1,0:T(1,128)}', space=vmem, size = 0x12000, scoped, tag = 'internal scratch']
  #allocation2 [shape = 'bf16[8,8,32]{2,1,0:T(8,128)(2,1)}', space=vmem, size = 0x4000, scoped, tag = 'scratch operand']
  %s0 = inlined_call_operand.hbm [shape: f32[8,8,32], index: 0, kind: input, shape index: {}]
  %s1 = inlined_call_operand.vmem [shape: bf16[32,128], index: 1, kind: input, shape index: {}]
  %s2 = inlined_call_operand.hbm [shape: bf16[32,128], index: 2, kind: input, shape index: {}]
  %s3 = inlined_call_operand.vmem [shape: f32[1,128], index: 3, kind: input, shape index: {}]
  %s4 = inlined_call_operand.hbm [shape: bf16[32,128], index: 4, kind: input, shape index: {}]
  %s5 = inlined_call_operand.vmem [shape: bf16[32,128], index: 5, kind: input, shape index: {}]
  %s6 = inlined_call_operand.vmem [shape: f32[1,128], index: 6, kind: input, shape index: {}]
  %s7 = inlined_call_operand.vmem [shape: bf16[32,16], index: 7, kind: input, shape index: {}]
  %s8 = inlined_call_operand.vmem [shape: f32[1,16], index: 8, kind: input, shape index: {}]
  %s9 = inlined_call_operand.hbm [shape: f32[8,16], index: 9, kind: output, shape index: {}]
  %s10 = sld [smem:[#allocation0]]
  $region58: #{tpu_custom_call.1} parent=0
    _
  %s12 = ssub.s32 1, %s10
  %s13 = scalar_select 0, %s12, %s10
  $region1: #{tpu_custom_call.1} parent=0
    #allocation3 [shape = 'u8[32768]{0}', space=vmem, size = 0x8000, scoped, tag = 'input window, operand 0, single buffered']
    #allocation4 [shape = 's32[1]{0}', space=sflag, size = 0x4, scoped, tag = 'scoped memory for tpu_custom_call.1']
    #allocation5 [shape = 's32[1]{0}', space=sflag, size = 0x4, scoped, tag = 'scoped memory for tpu_custom_call.1']
    #allocation6 [shape = 'u8[8192]{0}', space=vmem, size = 0x2000, scoped, tag = 'input window, operand 2, single buffered']
    #allocation7 [shape = 's32[1]{0}', space=sflag, size = 0x4, scoped, tag = 'scoped memory for tpu_custom_call.1']
    #allocation8 [shape = 'u8[8192]{0}', space=vmem, size = 0x2000, scoped, tag = 'input window, operand 4, single buffered']
    #allocation9 [shape = 'u8[4096]{0}', space=vmem, size = 0x1000, scoped, tag = 'output window, operand 0, single buffered']
    %14 = vsyncpa [#allocation4], 0
    %15 = vsyncpa [#allocation7], 0
    %16 = vsyncpa [#allocation5], 0
    // Predicated region
    $region2: #{tpu_custom_call.1} parent=1 // pred_check
      _
    $region3: #{tpu_custom_call.1} parent=1 // pred_check_branch
      %18 = sbr.rel (0) target = $region5
    $region4: #{tpu_custom_call.1} parent=1 // pred_region
      %s20 = ssub.s32 1024, 1024
      %21 = vsyncadd [#allocation4], %s20
      %s22 = sshll.u32 [#allocation3], 4
      %s23 = int_to_ptr.vmem [resolvable:$true] %s22
      %28 = dma.hbm_to_vmem [thread:$0]  %s0, 1024, %s23, [#allocation4], 128, 128, 8
    $region5: #{tpu_custom_call.1} parent=1 // pred_fallthru
      _
    // Predicated region
    $region6: #{tpu_custom_call.1} parent=1 // pred_check
      _
    $region7: #{tpu_custom_call.1} parent=1 // pred_check_branch
      %30 = sbr.rel (0) target = $region9
    $region8: #{tpu_custom_call.1} parent=1 // pred_region
      _
    $region9: #{tpu_custom_call.1} parent=1 // pred_fallthru
      _
    // Predicated region
    $region10: #{tpu_custom_call.1} parent=1 // pred_check
      _
    $region11: #{tpu_custom_call.1} parent=1 // pred_check_branch
      %32 = sbr.rel (0) target = $region13
    $region12: #{tpu_custom_call.1} parent=1 // pred_region
      %s34 = ssub.s32 256, 256
      %35 = vsyncadd [#allocation7], %s34
      %s36 = sshll.u32 [#allocation6], 4
      %s37 = int_to_ptr.vmem [resolvable:$true] %s36
      %42 = dma.hbm_to_vmem [thread:$0]  %s2, 256, %s37, [#allocation7], 64, 64, 4
    $region13: #{tpu_custom_call.1} parent=1 // pred_fallthru
      _
    // Predicated region
    $region14: #{tpu_custom_call.1} parent=1 // pred_check
      _
    $region15: #{tpu_custom_call.1} parent=1 // pred_check_branch
      %44 = sbr.rel (0) target = $region17
    $region16: #{tpu_custom_call.1} parent=1 // pred_region
      _
    $region17: #{tpu_custom_call.1} parent=1 // pred_fallthru
      _
    // Predicated region
    $region18: #{tpu_custom_call.1} parent=1 // pred_check
      _
    $region19: #{tpu_custom_call.1} parent=1 // pred_check_branch
      %46 = sbr.rel (0) target = $region21
    $region20: #{tpu_custom_call.1} parent=1 // pred_region
      %s48 = ssub.s32 256, 256
      %49 = vsyncadd [#allocation7], %s48
      %s50 = sshll.u32 [#allocation8], 4
      %s51 = int_to_ptr.vmem [resolvable:$true] %s50
      %56 = dma.hbm_to_vmem [thread:$0]  %s4, 256, %s51, [#allocation7], 64, 64, 4
    $region21: #{tpu_custom_call.1} parent=1 // pred_fallthru
      _
    // Predicated region
    $region22: #{tpu_custom_call.1} parent=1 // pred_check
      _
    $region23: #{tpu_custom_call.1} parent=1 // pred_check_branch
      %58 = sbr.rel (0) target = $region25
    $region24: #{tpu_custom_call.1} parent=1 // pred_region
      _
    $region25: #{tpu_custom_call.1} parent=1 // pred_fallthru
      _
    // Predicated region
    $region26: #{tpu_custom_call.1} parent=1 // pred_check
      _
    $region27: #{tpu_custom_call.1} parent=1 // pred_check_branch
      %60 = sbr.rel (0) target = $region29
    $region28: #{tpu_custom_call.1} parent=1 // pred_region
      _
    $region29: #{tpu_custom_call.1} parent=1 // pred_fallthru
      _
    // Predicated region
    $region30: #{tpu_custom_call.1} parent=1 // pred_check
      _
    $region31: #{tpu_custom_call.1} parent=1 // pred_check_branch
      %62 = sbr.rel (0) target = $region33
    $region32: #{tpu_custom_call.1} parent=1 // pred_region
      _
    $region33: #{tpu_custom_call.1} parent=1 // pred_fallthru
      _
    // Predicated region
    $region34: #{tpu_custom_call.1} parent=1 // pred_check
      _
    $region35: #{tpu_custom_call.1} parent=1 // pred_check_branch
      %64 = sbr.rel (0) target = $region37
    $region36: #{tpu_custom_call.1} parent=1 // pred_region
      _
    $region37: #{tpu_custom_call.1} parent=1 // pred_fallthru
      _
    // Predicated region
    $region38: #{tpu_custom_call.1} parent=1 // pred_check
      _
    $region39: #{tpu_custom_call.1} parent=1 // pred_check_branch
      %66 = sbr.rel (0) target = $region41
    $region40: #{tpu_custom_call.1} parent=1 // pred_region
      %67 = dma.done [#allocation4], 1024
    $region41: #{tpu_custom_call.1} parent=1 // pred_fallthru
      _
    // Predicated region
    $region42: #{tpu_custom_call.1} parent=1 // pred_check
      _
    $region43: #{tpu_custom_call.1} parent=1 // pred_check_branch
      %69 = sbr.rel (0) target = $region45
    $region44: #{tpu_custom_call.1} parent=1 // pred_region
      %70 = dma.done [#allocation7], 256
    $region45: #{tpu_custom_call.1} parent=1 // pred_fallthru
      _
    // Predicated region
    $region46: #{tpu_custom_call.1} parent=1 // pred_check
      _
    $region47: #{tpu_custom_call.1} parent=1 // pred_check_branch
      %72 = sbr.rel (0) target = $region49
    $region48: #{tpu_custom_call.1} parent=1 // pred_region
      %73 = dma.done [#allocation7], 256
    $region49: #{tpu_custom_call.1} parent=1 // pred_fallthru
      _
    %v75 = vld [vmem:[%s1] sm:$0xf]
    %v76 = vld [vmem:[%s1 + $0x4] sm:$0xf]
    %v77 = vld [vmem:[%s1 + $0x8] sm:$0xf]
    %v78 = vld [vmem:[%s1 + $0xc] sm:$0xf]
    %v79 = vld [vmem:[#allocation6] sm:$0xf]
    %v80 = vld [vmem:[#allocation6 + $0x4] sm:$0xf]
    %v81 = vld [vmem:[#allocation6 + $0x8] sm:$0xf]
    %v82 = vld [vmem:[#allocation6 + $0xc] sm:$0xf]
    %v83 = vld [vmem:[%s3] sm:$0x1]
    %v84 = vld [vmem:[#allocation3] sm:$0xff]
    %v85 = vld [vmem:[#allocation3 + $0x8] sm:$0xff]
    %v86 = vld [vmem:[#allocation3 + $0x10] sm:$0xff]
    %v87 = vld [vmem:[#allocation3 + $0x18] sm:$0xff]
    %v88 = vld [vmem:[#allocation3 + $0x20] sm:$0xff]
    %v89 = vld [vmem:[#allocation3 + $0x28] sm:$0xff]
    %v90 = vld [vmem:[#allocation3 + $0x30] sm:$0xff]
    %v91 = vld [vmem:[#allocation3 + $0x38] sm:$0xff]
    %v92 = vpack.c.bf16 %v84, %v84
    %v93 = vpack.c.bf16 %v85, %v85
    %v94 = vpack.c.bf16 %v86, %v86
    %v95 = vpack.c.bf16 %v87, %v87
    %v96 = vpack.c.bf16 %v88, %v88
    %v97 = vpack.c.bf16 %v89, %v89
    %v98 = vpack.c.bf16 %v90, %v90
    %v99 = vpack.c.bf16 %v91, %v91
    %v101 = vlaneseq
    %v102 = vshrl.u32 %v101, 7
    %v103 = vsub.s32 0, %v102
    %v104 = vrot.slane %v83, %v103
    %v114 = vunpack.c.l.b16 %v92
    %v115 = vunpack.c.l.b16 %v93
    %v116 = vunpack.c.l.b16 %v94
    %v117 = vunpack.c.l.b16 %v95
    %v118 = vunpack.c.l.b16 %v96
    %v119 = vunpack.c.l.b16 %v97
    %v120 = vunpack.c.l.b16 %v98
    %v121 = vunpack.c.l.b16 %v99
    %v122 = vpack.c.b16 %v115, %v114
    %v123 = vpack.c.b16 %v117, %v116
    %v124 = vpack.c.b16 %v119, %v118
    %v125 = vpack.c.b16 %v121, %v120
    %v130 = vunpack.c.l.b16 %v75
    %v131 = vunpack.c.l.b16 %v76
    %v132 = vunpack.c.l.b16 %v77
    %v133 = vunpack.c.l.b16 %v78
    %v134 = vpack.c.b16 %v131, %v130
    %v135 = vpack.c.b16 %v133, %v132
    %vm138 = vcmask 261120
    %v140 = vsel %vm138, %v122, 0
    %v143 = vsel %vm138, %v123, 0
    %v146 = vsel %vm138, %v124, 0
    %v149 = vsel %vm138, %v125, 0
    %151 = vmatprep.subr.bf16.mxu0 0
    %152 = vmatpush1.bf16.msra.mxu0 0
    %153 = vmatprep.subr.bf16.mxu0 0
    %154 = vmatpush1.bf16.msra.mxu0 0
    %155 = vmatprep.subr.bf16.mxu0 0
    %156 = vmatpush1.bf16.msra.mxu0 0
    %157 = vmatprep.subr.bf16.mxu0 0
    %158 = vmatpush1.bf16.msra.mxu0 0
    %159 = vmatprep.subr.bf16.mxu0 0
    %160 = vmatpush1.bf16.msra.mxu0 0
    %161 = vmatprep.subr.bf16.mxu0 0
    %162 = vmatpush1.bf16.msra.mxu0 0
    %163 = vmatprep.subr.bf16.mxu0 0
    %164 = vmatpush1.bf16.msra.mxu0 %v135
    %165 = vmatprep.subr.bf16.mxu0 0
    %166 = vmatpush1.bf16.msra.mxu0 %v134
    %167 = vmatprep.subr.bf16.mxu0 0
    %168 = vmatpush2.bf16.msra.mxu0 0
    %169 = vmatprep.subr.bf16.mxu0 0
    %170 = vmatpush2.bf16.msra.mxu0 0
    %171 = vmatprep.subr.bf16.mxu0 0
    %172 = vmatpush2.bf16.msra.mxu0 0
    %173 = vmatprep.subr.bf16.mxu0 0
    %174 = vmatpush2.bf16.msra.mxu0 0
    %175 = vmatprep.subr.bf16.mxu0 0
    %176 = vmatpush2.bf16.msra.mxu0 0
    %177 = vmatprep.subr.bf16.mxu0 0
    %178 = vmatpush2.bf16.msra.mxu0 0
    %179 = vmatprep.subr.bf16.mxu0 0
    %180 = vmatpush2.bf16.msra.mxu0 0
    %181 = vmatprep.subr.bf16.mxu0 0
    %182 = vmatpush2.bf16.msra.mxu0 0
    %183 = vmatprep.mubr.bf16.mxu0 0
    %184 = vmatmul.mubr.bf16.gmra.mxu0 %v140
    %v185 = vpop.f32.mrf.mxu0
    %v186 = vadd.f32 %v104, %v185
    %v187 = vpop.f32.mrf.mxu0
    %v188 = vpop.f32.mrf.mxu0
    %v189 = vadd.f32 %v104, %v188
    %v190 = vpop.f32.mrf.mxu0
    %191 = vmatprep.mubr.bf16.mxu0 0
    %192 = vmatmul.mubr.bf16.gmra.mxu0 %v143
    %v193 = vpop.f32.mrf.mxu0
    %v194 = vadd.f32 %v104, %v193
    %v195 = vpop.f32.mrf.mxu0
    %v196 = vpop.f32.mrf.mxu0
    %v197 = vadd.f32 %v104, %v196
    %v198 = vpop.f32.mrf.mxu0
    %199 = vmatprep.mubr.bf16.mxu0 0
    %200 = vmatmul.mubr.bf16.gmra.mxu0 %v146
    %v201 = vpop.f32.mrf.mxu0
    %v202 = vadd.f32 %v104, %v201
    %v203 = vpop.f32.mrf.mxu0
    %v204 = vpop.f32.mrf.mxu0
    %v205 = vadd.f32 %v104, %v204
    %v206 = vpop.f32.mrf.mxu0
    %207 = vmatprep.mubr.bf16.mxu0 0
    %208 = vmatmul.mubr.bf16.gmra.mxu0 %v149
    %v209 = vpop.f32.mrf.mxu0
    %v210 = vadd.f32 %v104, %v209
    %v211 = vpop.f32.mrf.mxu0
    %v212 = vpop.f32.mrf.mxu0
    %v213 = vadd.f32 %v104, %v212
    %v214 = vpop.f32.mrf.mxu0
    %215 = vdwg.mxu0
    %v220 = vunpack.c.l.b16 %v79
    %v221 = vunpack.c.l.b16 %v80
    %v222 = vunpack.c.l.b16 %v81
    %v223 = vunpack.c.l.b16 %v82
    %v224 = vpack.c.b16 %v221, %v220
    %v225 = vpack.c.b16 %v223, %v222
    %v229 = vsel %vm138, 0, 0
    %231 = vmatprep.subr.bf16.mxu0 0
    %232 = vmatpush1.bf16.msra.mxu0 0
    %233 = vmatprep.subr.bf16.mxu0 0
    %234 = vmatpush1.bf16.msra.mxu0 0
    %235 = vmatprep.subr.bf16.mxu0 0
    %236 = vmatpush1.bf16.msra.mxu0 0
    %237 = vmatprep.subr.bf16.mxu0 0
    %238 = vmatpush1.bf16.msra.mxu0 0
    %239 = vmatprep.subr.bf16.mxu0 0
    %240 = vmatpush1.bf16.msra.mxu0 0
    %241 = vmatprep.subr.bf16.mxu0 0
    %242 = vmatpush1.bf16.msra.mxu0 0
    %243 = vmatprep.subr.bf16.mxu0 0
    %244 = vmatpush1.bf16.msra.mxu0 %v225
    %245 = vmatprep.subr.bf16.mxu0 0
    %246 = vmatpush1.bf16.msra.mxu0 %v224
    %247 = vmatprep.subr.bf16.mxu0 0
    %248 = vmatpush2.bf16.msra.mxu0 0
    %249 = vmatprep.subr.bf16.mxu0 0
    %250 = vmatpush2.bf16.msra.mxu0 0
    %251 = vmatprep.subr.bf16.mxu0 0
    %252 = vmatpush2.bf16.msra.mxu0 0
    %253 = vmatprep.subr.bf16.mxu0 0
    %254 = vmatpush2.bf16.msra.mxu0 0
    %255 = vmatprep.subr.bf16.mxu0 0
    %256 = vmatpush2.bf16.msra.mxu0 0
    %257 = vmatprep.subr.bf16.mxu0 0
    %258 = vmatpush2.bf16.msra.mxu0 0
    %259 = vmatprep.subr.bf16.mxu0 0
    %260 = vmatpush2.bf16.msra.mxu0 0
    %261 = vmatprep.subr.bf16.mxu0 0
    %262 = vmatpush2.bf16.msra.mxu0 0
    %263 = vmatprep.mubr.bf16.mxu0 0
    %264 = vmatmul.mubr.bf16.gmra.mxu0 %v229
    %v265 = vpop.f32.mrf.mxu0
    %v266 = vadd.f32 0.0, %v265
    %v267 = vpop.f32.mrf.mxu0
    %v268 = vpop.f32.mrf.mxu0
    %v269 = vpop.f32.mrf.mxu0
    %270 = vdwg.mxu0
    %v271 = vadd.f32 %v186, %v266
    %v272 = vxor.u32 %v271, 2147483648
    %v273 = vmul.f32 %v272, 1.442695
    %v274 = vpow.pop %v273
    %v275 = vadd.f32 %v274, 1.0
    %v276 = vrcp.pop %v275
    %v277 = vmul.f32 1.0, %v276
    %v278 = vtanh.pop %v271
    %v279 = vmul.f32 %v277, 0.0
    %281 = vrot.lane.b32.xlu0 %v278, 64
    %v282 = vpop.permute.xlu0 %281
    %v284 = vmul.f32 %v277, %v282
    %286 = vrot.lane.b32.xlu0 %v284, 32
    %v287 = vpop.permute.xlu0 %286
    %v289 = vadd.f32 %v279, %v287
    %v290 = vtanh.pop %v289
    %292 = vrot.lane.b32.xlu0 %v290, 64
    %v293 = vpop.permute.xlu0 %292
    %v295 = vmul.f32 %v277, %v293
    %v296 = vpack.c.bf16 %v295, %v295
    %v298 = vunpack.c.l.b16 %v296
    %v299 = vpack.c.b16 %v298, %v298
    %300 = vrot.lane.b32.xlu0 %v299, 32
    %v301 = vpop.permute.xlu0 %300
    %vm303 = vcmask 257024
    %304 = vst.msk [vmem:[#allocation2] sm:$0xf] %vm303, %v301
    %305 = vrot.lane.b32.xlu0 %v296, 32
    %v306 = vpop.permute.xlu0 %305
    %v308 = vsel %vm138, %v306, 0
    %310 = vmatprep.subr.bf16.mxu0 0
    %311 = vmatpush1.bf16.msra.mxu0 0
    %312 = vmatprep.subr.bf16.mxu0 0
    %313 = vmatpush1.bf16.msra.mxu0 0
    %314 = vmatprep.subr.bf16.mxu0 0
    %315 = vmatpush1.bf16.msra.mxu0 0
    %316 = vmatprep.subr.bf16.mxu0 0
    %317 = vmatpush1.bf16.msra.mxu0 0
    %318 = vmatprep.subr.bf16.mxu0 0
    %319 = vmatpush1.bf16.msra.mxu0 0
    %320 = vmatprep.subr.bf16.mxu0 0
    %321 = vmatpush1.bf16.msra.mxu0 0
    %322 = vmatprep.subr.bf16.mxu0 0
    %323 = vmatpush1.bf16.msra.mxu0 %v225
    %324 = vmatprep.subr.bf16.mxu0 0
    %325 = vmatpush1.bf16.msra.mxu0 %v224
    %326 = vmatprep.subr.bf16.mxu0 0
    %327 = vmatpush2.bf16.msra.mxu0 0
    %328 = vmatprep.subr.bf16.mxu0 0
    %329 = vmatpush2.bf16.msra.mxu0 0
    %330 = vmatprep.subr.bf16.mxu0 0
    %331 = vmatpush2.bf16.msra.mxu0 0
    %332 = vmatprep.subr.bf16.mxu0 0
    %333 = vmatpush2.bf16.msra.mxu0 0
    %334 = vmatprep.subr.bf16.mxu0 0
    %335 = vmatpush2.bf16.msra.mxu0 0
    %336 = vmatprep.subr.bf16.mxu0 0
    %337 = vmatpush2.bf16.msra.mxu0 0
    %338 = vmatprep.subr.bf16.mxu0 0
    %339 = vmatpush2.bf16.msra.mxu0 0
    %340 = vmatprep.subr.bf16.mxu0 0
    %341 = vmatpush2.bf16.msra.mxu0 0
    %342 = vmatprep.mubr.bf16.mxu0 0
    %343 = vmatmul.mubr.bf16.gmra.mxu0 %v308
    %v344 = vpop.f32.mrf.mxu0
    %v345 = vadd.f32 0.0, %v344
    %v346 = vpop.f32.mrf.mxu0
    %v347 = vpop.f32.mrf.mxu0
    %v348 = vpop.f32.mrf.mxu0
    %349 = vdwg.mxu0
    %v350 = vadd.f32 %v189, %v345
    %v351 = vxor.u32 %v350, 2147483648
    %v352 = vmul.f32 %v351, 1.442695
    %v353 = vpow.pop %v352
    %v354 = vadd.f32 %v353, 1.0
    %v355 = vrcp.pop %v354
    %v356 = vmul.f32 1.0, %v355
    %v357 = vtanh.pop %v350
    %v358 = vmul.f32 %v356, %v289
    %360 = vrot.lane.b32.xlu0 %v357, 64
    %v361 = vpop.permute.xlu0 %360
    %v363 = vmul.f32 %v356, %v361
    %365 = vrot.lane.b32.xlu0 %v363, 32
    %v366 = vpop.permute.xlu0 %365
    %v368 = vadd.f32 %v358, %v366
    %v369 = vtanh.pop %v368
    %371 = vrot.lane.b32.xlu0 %v369, 64
    %v372 = vpop.permute.xlu0 %371
    %v374 = vmul.f32 %v356, %v372
    %v375 = vpack.c.bf16 %v374, %v374
    %v377 = vunpack.c.l.b16 %v375
    %v378 = vpack.c.b16 %v377, %v377
    %379 = vrot.lane.b32.xlu0 %v378, 32
    %v380 = vpop.permute.xlu0 %379
    %s382 = scalar_lea.vmem [#allocation2], 4
    %383 = vst.msk [vmem:[%s382] sm:$0xf] %vm303, %v380
    %384 = vrot.lane.b32.xlu0 %v375, 32
    %v385 = vpop.permute.xlu0 %384
    %v387 = vsel %vm138, %v385, 0
    %389 = vmatprep.subr.bf16.mxu0 0
    %390 = vmatpush1.bf16.msra.mxu0 0
    %391 = vmatprep.subr.bf16.mxu0 0
    %392 = vmatpush1.bf16.msra.mxu0 0
    %393 = vmatprep.subr.bf16.mxu0 0
    %394 = vmatpush1.bf16.msra.mxu0 0
    %395 = vmatprep.subr.bf16.mxu0 0
    %396 = vmatpush1.bf16.msra.mxu0 0
    %397 = vmatprep.subr.bf16.mxu0 0
    %398 = vmatpush1.bf16.msra.mxu0 0
    %399 = vmatprep.subr.bf16.mxu0 0
    %400 = vmatpush1.bf16.msra.mxu0 0
    %401 = vmatprep.subr.bf16.mxu0 0
    %402 = vmatpush1.bf16.msra.mxu0 %v225
    %403 = vmatprep.subr.bf16.mxu0 0
    %404 = vmatpush1.bf16.msra.mxu0 %v224
    %405 = vmatprep.subr.bf16.mxu0 0
    %406 = vmatpush2.bf16.msra.mxu0 0
    %407 = vmatprep.subr.bf16.mxu0 0
    %408 = vmatpush2.bf16.msra.mxu0 0
    %409 = vmatprep.subr.bf16.mxu0 0
    %410 = vmatpush2.bf16.msra.mxu0 0
    %411 = vmatprep.subr.bf16.mxu0 0
    %412 = vmatpush2.bf16.msra.mxu0 0
    %413 = vmatprep.subr.bf16.mxu0 0
    %414 = vmatpush2.bf16.msra.mxu0 0
    %415 = vmatprep.subr.bf16.mxu0 0
    %416 = vmatpush2.bf16.msra.mxu0 0
    %417 = vmatprep.subr.bf16.mxu0 0
    %418 = vmatpush2.bf16.msra.mxu0 0
    %419 = vmatprep.subr.bf16.mxu0 0
    %420 = vmatpush2.bf16.msra.mxu0 0
    %421 = vmatprep.mubr.bf16.mxu0 0
    %422 = vmatmul.mubr.bf16.gmra.mxu0 %v387
    %v423 = vpop.f32.mrf.mxu0
    %v424 = vadd.f32 0.0, %v423
    %v425 = vpop.f32.mrf.mxu0
    %v426 = vpop.f32.mrf.mxu0
    %v427 = vpop.f32.mrf.mxu0
    %428 = vdwg.mxu0
    %v429 = vadd.f32 %v194, %v424
    %v430 = vxor.u32 %v429, 2147483648
    %v431 = vmul.f32 %v430, 1.442695
    %v432 = vpow.pop %v431
    %v433 = vadd.f32 %v432, 1.0
    %v434 = vrcp.pop %v433
    %v435 = vmul.f32 1.0, %v434
    %v436 = vtanh.pop %v429
    %v437 = vmul.f32 %v435, %v368
    %439 = vrot.lane.b32.xlu0 %v436, 64
    %v440 = vpop.permute.xlu0 %439
    %v442 = vmul.f32 %v435, %v440
    %444 = vrot.lane.b32.xlu0 %v442, 32
    %v445 = vpop.permute.xlu0 %444
    %v447 = vadd.f32 %v437, %v445
    %v448 = vtanh.pop %v447
    %450 = vrot.lane.b32.xlu0 %v448, 64
    %v451 = vpop.permute.xlu0 %450
    %v453 = vmul.f32 %v435, %v451
    %v454 = vpack.c.bf16 %v453, %v453
    %v456 = vunpack.c.l.b16 %v454
    %v457 = vpack.c.b16 %v456, %v456
    %458 = vrot.lane.b32.xlu0 %v457, 32
    %v459 = vpop.permute.xlu0 %458
    %s461 = scalar_lea.vmem [#allocation2], 8
    %462 = vst.msk [vmem:[%s461] sm:$0xf] %vm303, %v459
    %463 = vrot.lane.b32.xlu0 %v454, 32
    %v464 = vpop.permute.xlu0 %463
    %v466 = vsel %vm138, %v464, 0
    %468 = vmatprep.subr.bf16.mxu0 0
    %469 = vmatpush1.bf16.msra.mxu0 0
    %470 = vmatprep.subr.bf16.mxu0 0
    %471 = vmatpush1.bf16.msra.mxu0 0
    %472 = vmatprep.subr.bf16.mxu0 0
    %473 = vmatpush1.bf16.msra.mxu0 0
    %474 = vmatprep.subr.bf16.mxu0 0
    %475 = vmatpush1.bf16.msra.mxu0 0
    %476 = vmatprep.subr.bf16.mxu0 0
    %477 = vmatpush1.bf16.msra.mxu0 0
    %478 = vmatprep.subr.bf16.mxu0 0
    %479 = vmatpush1.bf16.msra.mxu0 0
    %480 = vmatprep.subr.bf16.mxu0 0
    %481 = vmatpush1.bf16.msra.mxu0 %v225
    %482 = vmatprep.subr.bf16.mxu0 0
    %483 = vmatpush1.bf16.msra.mxu0 %v224
    %484 = vmatprep.subr.bf16.mxu0 0
    %485 = vmatpush2.bf16.msra.mxu0 0
    %486 = vmatprep.subr.bf16.mxu0 0
    %487 = vmatpush2.bf16.msra.mxu0 0
    %488 = vmatprep.subr.bf16.mxu0 0
    %489 = vmatpush2.bf16.msra.mxu0 0
    %490 = vmatprep.subr.bf16.mxu0 0
    %491 = vmatpush2.bf16.msra.mxu0 0
    %492 = vmatprep.subr.bf16.mxu0 0
    %493 = vmatpush2.bf16.msra.mxu0 0
    %494 = vmatprep.subr.bf16.mxu0 0
    %495 = vmatpush2.bf16.msra.mxu0 0
    %496 = vmatprep.subr.bf16.mxu0 0
    %497 = vmatpush2.bf16.msra.mxu0 0
    %498 = vmatprep.subr.bf16.mxu0 0
    %499 = vmatpush2.bf16.msra.mxu0 0
    %500 = vmatprep.mubr.bf16.mxu0 0
    %501 = vmatmul.mubr.bf16.gmra.mxu0 %v466
    %v502 = vpop.f32.mrf.mxu0
    %v503 = vadd.f32 0.0, %v502
    %v504 = vpop.f32.mrf.mxu0
    %v505 = vpop.f32.mrf.mxu0
    %v506 = vpop.f32.mrf.mxu0
    %507 = vdwg.mxu0
    %v508 = vadd.f32 %v197, %v503
    %v509 = vxor.u32 %v508, 2147483648
    %v510 = vmul.f32 %v509, 1.442695
    %v511 = vpow.pop %v510
    %v512 = vadd.f32 %v511, 1.0
    %v513 = vrcp.pop %v512
    %v514 = vmul.f32 1.0, %v513
    %v515 = vtanh.pop %v508
    %v516 = vmul.f32 %v514, %v447
    %518 = vrot.lane.b32.xlu0 %v515, 64
    %v519 = vpop.permute.xlu0 %518
    %v521 = vmul.f32 %v514, %v519
    %523 = vrot.lane.b32.xlu0 %v521, 32
    %v524 = vpop.permute.xlu0 %523
    %v526 = vadd.f32 %v516, %v524
    %v527 = vtanh.pop %v526
    %529 = vrot.lane.b32.xlu0 %v527, 64
    %v530 = vpop.permute.xlu0 %529
    %v532 = vmul.f32 %v514, %v530
    %v533 = vpack.c.bf16 %v532, %v532
    %v535 = vunpack.c.l.b16 %v533
    %v536 = vpack.c.b16 %v535, %v535
    %537 = vrot.lane.b32.xlu0 %v536, 32
    %v538 = vpop.permute.xlu0 %537
    %s540 = scalar_lea.vmem [#allocation2], 12
    %541 = vst.msk [vmem:[%s540] sm:$0xf] %vm303, %v538
    %542 = vrot.lane.b32.xlu0 %v533, 32
    %v543 = vpop.permute.xlu0 %542
    %v545 = vsel %vm138, %v543, 0
    %547 = vmatprep.subr.bf16.mxu0 0
    %548 = vmatpush1.bf16.msra.mxu0 0
    %549 = vmatprep.subr.bf16.mxu0 0
    %550 = vmatpush1.bf16.msra.mxu0 0
    %551 = vmatprep.subr.bf16.mxu0 0
    %552 = vmatpush1.bf16.msra.mxu0 0
    %553 = vmatprep.subr.bf16.mxu0 0
    %554 = vmatpush1.bf16.msra.mxu0 0
    %555 = vmatprep.subr.bf16.mxu0 0
    %556 = vmatpush1.bf16.msra.mxu0 0
    %557 = vmatprep.subr.bf16.mxu0 0
    %558 = vmatpush1.bf16.msra.mxu0 0
    %559 = vmatprep.subr.bf16.mxu0 0
    %560 = vmatpush1.bf16.msra.mxu0 %v225
    %561 = vmatprep.subr.bf16.mxu0 0
    %562 = vmatpush1.bf16.msra.mxu0 %v224
    %563 = vmatprep.subr.bf16.mxu0 0
    %564 = vmatpush2.bf16.msra.mxu0 0
    %565 = vmatprep.subr.bf16.mxu0 0
    %566 = vmatpush2.bf16.msra.mxu0 0
    %567 = vmatprep.subr.bf16.mxu0 0
    %568 = vmatpush2.bf16.msra.mxu0 0
    %569 = vmatprep.subr.bf16.mxu0 0
    %570 = vmatpush2.bf16.msra.mxu0 0
    %571 = vmatprep.subr.bf16.mxu0 0
    %572 = vmatpush2.bf16.msra.mxu0 0
    %573 = vmatprep.subr.bf16.mxu0 0
    %574 = vmatpush2.bf16.msra.mxu0 0
    %575 = vmatprep.subr.bf16.mxu0 0
    %576 = vmatpush2.bf16.msra.mxu0 0
    %577 = vmatprep.subr.bf16.mxu0 0
    %578 = vmatpush2.bf16.msra.mxu0 0
    %579 = vmatprep.mubr.bf16.mxu0 0
    %580 = vmatmul.mubr.bf16.gmra.mxu0 %v545
    %v581 = vpop.f32.mrf.mxu0
    %v582 = vadd.f32 0.0, %v581
    %v583 = vpop.f32.mrf.mxu0
    %v584 = vpop.f32.mrf.mxu0
    %v585 = vpop.f32.mrf.mxu0
    %586 = vdwg.mxu0
    %v587 = vadd.f32 %v202, %v582
    %v588 = vxor.u32 %v587, 2147483648
    %v589 = vmul.f32 %v588, 1.442695
    %v590 = vpow.pop %v589
    %v591 = vadd.f32 %v590, 1.0
    %v592 = vrcp.pop %v591
    %v593 = vmul.f32 1.0, %v592
    %v594 = vtanh.pop %v587
    %v595 = vmul.f32 %v593, %v526
    %597 = vrot.lane.b32.xlu0 %v594, 64
    %v598 = vpop.permute.xlu0 %597
    %v600 = vmul.f32 %v593, %v598
    %602 = vrot.lane.b32.xlu0 %v600, 32
    %v603 = vpop.permute.xlu0 %602
    %v605 = vadd.f32 %v595, %v603
    %v606 = vtanh.pop %v605
    %608 = vrot.lane.b32.xlu0 %v606, 64
    %v609 = vpop.permute.xlu0 %608
    %v611 = vmul.f32 %v593, %v609
    %v612 = vpack.c.bf16 %v611, %v611
    %v614 = vunpack.c.l.b16 %v612
    %v615 = vpack.c.b16 %v614, %v614
    %616 = vrot.lane.b32.xlu0 %v615, 32
    %v617 = vpop.permute.xlu0 %616
    %s619 = scalar_lea.vmem [#allocation2], 16
    %620 = vst.msk [vmem:[%s619] sm:$0xf] %vm303, %v617
    %621 = vrot.lane.b32.xlu0 %v612, 32
    %v622 = vpop.permute.xlu0 %621
    %v624 = vsel %vm138, %v622, 0
    %626 = vmatprep.subr.bf16.mxu0 0
    %627 = vmatpush1.bf16.msra.mxu0 0
    %628 = vmatprep.subr.bf16.mxu0 0
    %629 = vmatpush1.bf16.msra.mxu0 0
    %630 = vmatprep.subr.bf16.mxu0 0
    %631 = vmatpush1.bf16.msra.mxu0 0
    %632 = vmatprep.subr.bf16.mxu0 0
    %633 = vmatpush1.bf16.msra.mxu0 0
    %634 = vmatprep.subr.bf16.mxu0 0
    %635 = vmatpush1.bf16.msra.mxu0 0
    %636 = vmatprep.subr.bf16.mxu0 0
    %637 = vmatpush1.bf16.msra.mxu0 0
    %638 = vmatprep.subr.bf16.mxu0 0
    %639 = vmatpush1.bf16.msra.mxu0 %v225
    %640 = vmatprep.subr.bf16.mxu0 0
    %641 = vmatpush1.bf16.msra.mxu0 %v224
    %642 = vmatprep.subr.bf16.mxu0 0
    %643 = vmatpush2.bf16.msra.mxu0 0
    %644 = vmatprep.subr.bf16.mxu0 0
    %645 = vmatpush2.bf16.msra.mxu0 0
    %646 = vmatprep.subr.bf16.mxu0 0
    %647 = vmatpush2.bf16.msra.mxu0 0
    %648 = vmatprep.subr.bf16.mxu0 0
    %649 = vmatpush2.bf16.msra.mxu0 0
    %650 = vmatprep.subr.bf16.mxu0 0
    %651 = vmatpush2.bf16.msra.mxu0 0
    %652 = vmatprep.subr.bf16.mxu0 0
    %653 = vmatpush2.bf16.msra.mxu0 0
    %654 = vmatprep.subr.bf16.mxu0 0
    %655 = vmatpush2.bf16.msra.mxu0 0
    %656 = vmatprep.subr.bf16.mxu0 0
    %657 = vmatpush2.bf16.msra.mxu0 0
    %658 = vmatprep.mubr.bf16.mxu0 0
    %659 = vmatmul.mubr.bf16.gmra.mxu0 %v624
    %v660 = vpop.f32.mrf.mxu0
    %v661 = vadd.f32 0.0, %v660
    %v662 = vpop.f32.mrf.mxu0
    %v663 = vpop.f32.mrf.mxu0
    %v664 = vpop.f32.mrf.mxu0
    %665 = vdwg.mxu0
    %v666 = vadd.f32 %v205, %v661
    %v667 = vxor.u32 %v666, 2147483648
    %v668 = vmul.f32 %v667, 1.442695
    %v669 = vpow.pop %v668
    %v670 = vadd.f32 %v669, 1.0
    %v671 = vrcp.pop %v670
    %v672 = vmul.f32 1.0, %v671
    %v673 = vtanh.pop %v666
    %v674 = vmul.f32 %v672, %v605
    %676 = vrot.lane.b32.xlu0 %v673, 64
    %v677 = vpop.permute.xlu0 %676
    %v679 = vmul.f32 %v672, %v677
    %681 = vrot.lane.b32.xlu0 %v679, 32
    %v682 = vpop.permute.xlu0 %681
    %v684 = vadd.f32 %v674, %v682
    %v685 = vtanh.pop %v684
    %687 = vrot.lane.b32.xlu0 %v685, 64
    %v688 = vpop.permute.xlu0 %687
    %v690 = vmul.f32 %v672, %v688
    %v691 = vpack.c.bf16 %v690, %v690
    %v693 = vunpack.c.l.b16 %v691
    %v694 = vpack.c.b16 %v693, %v693
    %695 = vrot.lane.b32.xlu0 %v694, 32
    %v696 = vpop.permute.xlu0 %695
    %s698 = scalar_lea.vmem [#allocation2], 20
    %699 = vst.msk [vmem:[%s698] sm:$0xf] %vm303, %v696
    %700 = vrot.lane.b32.xlu0 %v691, 32
    %v701 = vpop.permute.xlu0 %700
    %v703 = vsel %vm138, %v701, 0
    %705 = vmatprep.subr.bf16.mxu0 0
    %706 = vmatpush1.bf16.msra.mxu0 0
    %707 = vmatprep.subr.bf16.mxu0 0
    %708 = vmatpush1.bf16.msra.mxu0 0
    %709 = vmatprep.subr.bf16.mxu0 0
    %710 = vmatpush1.bf16.msra.mxu0 0
    %711 = vmatprep.subr.bf16.mxu0 0
    %712 = vmatpush1.bf16.msra.mxu0 0
    %713 = vmatprep.subr.bf16.mxu0 0
    %714 = vmatpush1.bf16.msra.mxu0 0
    %715 = vmatprep.subr.bf16.mxu0 0
    %716 = vmatpush1.bf16.msra.mxu0 0
    %717 = vmatprep.subr.bf16.mxu0 0
    %718 = vmatpush1.bf16.msra.mxu0 %v225
    %719 = vmatprep.subr.bf16.mxu0 0
    %720 = vmatpush1.bf16.msra.mxu0 %v224
    %721 = vmatprep.subr.bf16.mxu0 0
    %722 = vmatpush2.bf16.msra.mxu0 0
    %723 = vmatprep.subr.bf16.mxu0 0
    %724 = vmatpush2.bf16.msra.mxu0 0
    %725 = vmatprep.subr.bf16.mxu0 0
    %726 = vmatpush2.bf16.msra.mxu0 0
    %727 = vmatprep.subr.bf16.mxu0 0
    %728 = vmatpush2.bf16.msra.mxu0 0
    %729 = vmatprep.subr.bf16.mxu0 0
    %730 = vmatpush2.bf16.msra.mxu0 0
    %731 = vmatprep.subr.bf16.mxu0 0
    %732 = vmatpush2.bf16.msra.mxu0 0
    %733 = vmatprep.subr.bf16.mxu0 0
    %734 = vmatpush2.bf16.msra.mxu0 0
    %735 = vmatprep.subr.bf16.mxu0 0
    %736 = vmatpush2.bf16.msra.mxu0 0
    %737 = vmatprep.mubr.bf16.mxu0 0
    %738 = vmatmul.mubr.bf16.gmra.mxu0 %v703
    %v739 = vpop.f32.mrf.mxu0
    %v740 = vadd.f32 0.0, %v739
    %v741 = vpop.f32.mrf.mxu0
    %v742 = vpop.f32.mrf.mxu0
    %v743 = vpop.f32.mrf.mxu0
    %744 = vdwg.mxu0
    %v745 = vadd.f32 %v210, %v740
    %v746 = vxor.u32 %v745, 2147483648
    %v747 = vmul.f32 %v746, 1.442695
    %v748 = vpow.pop %v747
    %v749 = vadd.f32 %v748, 1.0
    %v750 = vrcp.pop %v749
    %v751 = vmul.f32 1.0, %v750
    %v752 = vtanh.pop %v745
    %v753 = vmul.f32 %v751, %v684
    %755 = vrot.lane.b32.xlu0 %v752, 64
    %v756 = vpop.permute.xlu0 %755
    %v758 = vmul.f32 %v751, %v756
    %760 = vrot.lane.b32.xlu0 %v758, 32
    %v761 = vpop.permute.xlu0 %760
    %v763 = vadd.f32 %v753, %v761
    %v764 = vtanh.pop %v763
    %766 = vrot.lane.b32.xlu0 %v764, 64
    %v767 = vpop.permute.xlu0 %766
    %v769 = vmul.f32 %v751, %v767
    %v770 = vpack.c.bf16 %v769, %v769
    %v772 = vunpack.c.l.b16 %v770
    %v773 = vpack.c.b16 %v772, %v772
    %774 = vrot.lane.b32.xlu0 %v773, 32
    %v775 = vpop.permute.xlu0 %774
    %s777 = scalar_lea.vmem [#allocation2], 24
    %778 = vst.msk [vmem:[%s777] sm:$0xf] %vm303, %v775
    %779 = vrot.lane.b32.xlu0 %v770, 32
    %v780 = vpop.permute.xlu0 %779
    %v782 = vsel %vm138, %v780, 0
    %784 = vmatprep.subr.bf16.mxu0 0
    %785 = vmatpush1.bf16.msra.mxu0 0
    %786 = vmatprep.subr.bf16.mxu0 0
    %787 = vmatpush1.bf16.msra.mxu0 0
    %788 = vmatprep.subr.bf16.mxu0 0
    %789 = vmatpush1.bf16.msra.mxu0 0
    %790 = vmatprep.subr.bf16.mxu0 0
    %791 = vmatpush1.bf16.msra.mxu0 0
    %792 = vmatprep.subr.bf16.mxu0 0
    %793 = vmatpush1.bf16.msra.mxu0 0
    %794 = vmatprep.subr.bf16.mxu0 0
    %795 = vmatpush1.bf16.msra.mxu0 0
    %796 = vmatprep.subr.bf16.mxu0 0
    %797 = vmatpush1.bf16.msra.mxu0 %v225
    %798 = vmatprep.subr.bf16.mxu0 0
    %799 = vmatpush1.bf16.msra.mxu0 %v224
    %800 = vmatprep.subr.bf16.mxu0 0
    %801 = vmatpush2.bf16.msra.mxu0 0
    %802 = vmatprep.subr.bf16.mxu0 0
    %803 = vmatpush2.bf16.msra.mxu0 0
    %804 = vmatprep.subr.bf16.mxu0 0
    %805 = vmatpush2.bf16.msra.mxu0 0
    %806 = vmatprep.subr.bf16.mxu0 0
    %807 = vmatpush2.bf16.msra.mxu0 0
    %808 = vmatprep.subr.bf16.mxu0 0
    %809 = vmatpush2.bf16.msra.mxu0 0
    %810 = vmatprep.subr.bf16.mxu0 0
    %811 = vmatpush2.bf16.msra.mxu0 0
    %812 = vmatprep.subr.bf16.mxu0 0
    %813 = vmatpush2.bf16.msra.mxu0 0
    %814 = vmatprep.subr.bf16.mxu0 0
    %815 = vmatpush2.bf16.msra.mxu0 0
    %816 = vmatprep.mubr.bf16.mxu0 0
    %817 = vmatmul.mubr.bf16.gmra.mxu0 %v782
    %v818 = vpop.f32.mrf.mxu0
    %v819 = vadd.f32 0.0, %v818
    %v820 = vpop.f32.mrf.mxu0
    %v821 = vpop.f32.mrf.mxu0
    %v822 = vpop.f32.mrf.mxu0
    %823 = vdwg.mxu0
    %v824 = vadd.f32 %v213, %v819
    %v825 = vxor.u32 %v824, 2147483648
    %v826 = vmul.f32 %v825, 1.442695
    %v827 = vpow.pop %v826
    %v828 = vadd.f32 %v827, 1.0
    %v829 = vrcp.pop %v828
    %v830 = vmul.f32 1.0, %v829
    %v831 = vtanh.pop %v824
    %v832 = vmul.f32 %v830, %v763
    %834 = vrot.lane.b32.xlu0 %v831, 64
    %v835 = vpop.permute.xlu0 %834
    %v837 = vmul.f32 %v830, %v835
    %839 = vrot.lane.b32.xlu0 %v837, 32
    %v840 = vpop.permute.xlu0 %839
    %v842 = vadd.f32 %v832, %v840
    %v843 = vtanh.pop %v842
    %845 = vrot.lane.b32.xlu0 %v843, 64
    %v846 = vpop.permute.xlu0 %845
    %v848 = vmul.f32 %v830, %v846
    %v849 = vpack.c.bf16 %v848, %v848
    %v851 = vunpack.c.l.b16 %v849
    %v852 = vpack.c.b16 %v851, %v851
    %853 = vrot.lane.b32.xlu0 %v852, 32
    %v854 = vpop.permute.xlu0 %853
    %s856 = scalar_lea.vmem [#allocation2], 28
    %857 = vst.msk [vmem:[%s856] sm:$0xf] %vm303, %v854
    %v858 = vld [vmem:[#allocation8] sm:$0xf]
    %v859 = vld [vmem:[#allocation8 + $0x4] sm:$0xf]
    %v860 = vld [vmem:[#allocation8 + $0x8] sm:$0xf]
    %v861 = vld [vmem:[#allocation8 + $0xc] sm:$0xf]
    %v862 = vld [vmem:[%s5] sm:$0xf]
    %v863 = vld [vmem:[%s5 + $0x4] sm:$0xf]
    %v864 = vld [vmem:[%s5 + $0x8] sm:$0xf]
    %v865 = vld [vmem:[%s5 + $0xc] sm:$0xf]
    %v866 = vld [vmem:[%s6] sm:$0x1]
    %v867 = vld [vmem:[#allocation2] sm:$0xf]
    %v868 = vld [vmem:[#allocation2 + $0x4] sm:$0xf]
    %v869 = vld [vmem:[#allocation2 + $0x8] sm:$0xf]
    %v870 = vld [vmem:[#allocation2 + $0xc] sm:$0xf]
    %v871 = vld [vmem:[#allocation2 + $0x10] sm:$0xf]
    %v872 = vld [vmem:[#allocation2 + $0x14] sm:$0xf]
    %v873 = vld [vmem:[#allocation2 + $0x18] sm:$0xf]
    %v874 = vld [vmem:[#allocation2 + $0x1c] sm:$0xf]
    %v876 = vlaneseq
    %v877 = vshrl.u32 %v876, 7
    %v878 = vsub.s32 0, %v877
    %v879 = vrot.slane %v866, %v878
    %v889 = vunpack.c.l.b16 %v867
    %v890 = vunpack.c.l.b16 %v868
    %v891 = vunpack.c.l.b16 %v869
    %v892 = vunpack.c.l.b16 %v870
    %v893 = vunpack.c.l.b16 %v871
    %v894 = vunpack.c.l.b16 %v872
    %v895 = vunpack.c.l.b16 %v873
    %v896 = vunpack.c.l.b16 %v874
    %v897 = vpack.c.b16 %v890, %v889
    %v898 = vpack.c.b16 %v892, %v891
    %v899 = vpack.c.b16 %v894, %v893
    %v900 = vpack.c.b16 %v896, %v895
    %v905 = vunpack.c.l.b16 %v858
    %v906 = vunpack.c.l.b16 %v859
    %v907 = vunpack.c.l.b16 %v860
    %v908 = vunpack.c.l.b16 %v861
    %v909 = vpack.c.b16 %v906, %v905
    %v910 = vpack.c.b16 %v908, %v907
    %v914 = vsel %vm138, %v897, 0
    %v917 = vsel %vm138, %v898, 0
    %v920 = vsel %vm138, %v899, 0
    %v923 = vsel %vm138, %v900, 0
    %925 = vmatprep.subr.bf16.mxu0 0
    %926 = vmatpush1.bf16.msra.mxu0 0
    %927 = vmatprep.subr.bf16.mxu0 0
    %928 = vmatpush1.bf16.msra.mxu0 0
    %929 = vmatprep.subr.bf16.mxu0 0
    %930 = vmatpush1.bf16.msra.mxu0 0
    %931 = vmatprep.subr.bf16.mxu0 0
    %932 = vmatpush1.bf16.msra.mxu0 0
    %933 = vmatprep.subr.bf16.mxu0 0
    %934 = vmatpush1.bf16.msra.mxu0 0
    %935 = vmatprep.subr.bf16.mxu0 0
    %936 = vmatpush1.bf16.msra.mxu0 0
    %937 = vmatprep.subr.bf16.mxu0 0
    %938 = vmatpush1.bf16.msra.mxu0 %v910
    %939 = vmatprep.subr.bf16.mxu0 0
    %940 = vmatpush1.bf16.msra.mxu0 %v909
    %941 = vmatprep.subr.bf16.mxu0 0
    %942 = vmatpush2.bf16.msra.mxu0 0
    %943 = vmatprep.subr.bf16.mxu0 0
    %944 = vmatpush2.bf16.msra.mxu0 0
    %945 = vmatprep.subr.bf16.mxu0 0
    %946 = vmatpush2.bf16.msra.mxu0 0
    %947 = vmatprep.subr.bf16.mxu0 0
    %948 = vmatpush2.bf16.msra.mxu0 0
    %949 = vmatprep.subr.bf16.mxu0 0
    %950 = vmatpush2.bf16.msra.mxu0 0
    %951 = vmatprep.subr.bf16.mxu0 0
    %952 = vmatpush2.bf16.msra.mxu0 0
    %953 = vmatprep.subr.bf16.mxu0 0
    %954 = vmatpush2.bf16.msra.mxu0 0
    %955 = vmatprep.subr.bf16.mxu0 0
    %956 = vmatpush2.bf16.msra.mxu0 0
    %957 = vmatprep.mubr.bf16.mxu0 0
    %958 = vmatmul.mubr.bf16.gmra.mxu0 %v914
    %v959 = vpop.f32.mrf.mxu0
    %v960 = vadd.f32 %v879, %v959
    %v961 = vpop.f32.mrf.mxu0
    %v962 = vpop.f32.mrf.mxu0
    %v963 = vadd.f32 %v879, %v962
    %v964 = vpop.f32.mrf.mxu0
    %965 = vmatprep.mubr.bf16.mxu0 0
    %966 = vmatmul.mubr.bf16.gmra.mxu0 %v917
    %v967 = vpop.f32.mrf.mxu0
    %v968 = vadd.f32 %v879, %v967
    %v969 = vpop.f32.mrf.mxu0
    %v970 = vpop.f32.mrf.mxu0
    %v971 = vadd.f32 %v879, %v970
    %v972 = vpop.f32.mrf.mxu0
    %973 = vmatprep.mubr.bf16.mxu0 0
    %974 = vmatmul.mubr.bf16.gmra.mxu0 %v920
    %v975 = vpop.f32.mrf.mxu0
    %v976 = vadd.f32 %v879, %v975
    %v977 = vpop.f32.mrf.mxu0
    %v978 = vpop.f32.mrf.mxu0
    %v979 = vadd.f32 %v879, %v978
    %v980 = vpop.f32.mrf.mxu0
    %981 = vmatprep.mubr.bf16.mxu0 0
    %982 = vmatmul.mubr.bf16.gmra.mxu0 %v923
    %v983 = vpop.f32.mrf.mxu0
    %v984 = vadd.f32 %v879, %v983
    %v985 = vpop.f32.mrf.mxu0
    %v986 = vpop.f32.mrf.mxu0
    %v987 = vadd.f32 %v879, %v986
    %v988 = vpop.f32.mrf.mxu0
    %989 = vdwg.mxu0
    %v994 = vunpack.c.l.b16 %v862
    %v995 = vunpack.c.l.b16 %v863
    %v996 = vunpack.c.l.b16 %v864
    %v997 = vunpack.c.l.b16 %v865
    %v998 = vpack.c.b16 %v995, %v994
    %v999 = vpack.c.b16 %v997, %v996
    %1002 = vmatprep.subr.bf16.mxu0 0
    %1003 = vmatpush1.bf16.msra.mxu0 0
    %1004 = vmatprep.subr.bf16.mxu0 0
    %1005 = vmatpush1.bf16.msra.mxu0 0
    %1006 = vmatprep.subr.bf16.mxu0 0
    %1007 = vmatpush1.bf16.msra.mxu0 0
    %1008 = vmatprep.subr.bf16.mxu0 0
    %1009 = vmatpush1.bf16.msra.mxu0 0
    %1010 = vmatprep.subr.bf16.mxu0 0
    %1011 = vmatpush1.bf16.msra.mxu0 0
    %1012 = vmatprep.subr.bf16.mxu0 0
    %1013 = vmatpush1.bf16.msra.mxu0 0
    %1014 = vmatprep.subr.bf16.mxu0 0
    %1015 = vmatpush1.bf16.msra.mxu0 %v999
    %1016 = vmatprep.subr.bf16.mxu0 0
    %1017 = vmatpush1.bf16.msra.mxu0 %v998
    %1018 = vmatprep.subr.bf16.mxu0 0
    %1019 = vmatpush2.bf16.msra.mxu0 0
    %1020 = vmatprep.subr.bf16.mxu0 0
    %1021 = vmatpush2.bf16.msra.mxu0 0
    %1022 = vmatprep.subr.bf16.mxu0 0
    %1023 = vmatpush2.bf16.msra.mxu0 0
    %1024 = vmatprep.subr.bf16.mxu0 0
    %1025 = vmatpush2.bf16.msra.mxu0 0
    %1026 = vmatprep.subr.bf16.mxu0 0
    %1027 = vmatpush2.bf16.msra.mxu0 0
    %1028 = vmatprep.subr.bf16.mxu0 0
    %1029 = vmatpush2.bf16.msra.mxu0 0
    %1030 = vmatprep.subr.bf16.mxu0 0
    %1031 = vmatpush2.bf16.msra.mxu0 0
    %1032 = vmatprep.subr.bf16.mxu0 0
    %1033 = vmatpush2.bf16.msra.mxu0 0
    %1034 = vmatprep.mubr.bf16.mxu0 0
    %1035 = vmatmul.mubr.bf16.gmra.mxu0 %v229
    %v1036 = vpop.f32.mrf.mxu0
    %v1037 = vadd.f32 0.0, %v1036
    %v1038 = vpop.f32.mrf.mxu0
    %v1039 = vpop.f32.mrf.mxu0
    %v1040 = vpop.f32.mrf.mxu0
    %1041 = vdwg.mxu0
    %v1042 = vadd.f32 %v960, %v1037
    %v1043 = vxor.u32 %v1042, 2147483648
    %v1044 = vmul.f32 %v1043, 1.442695
    %v1045 = vpow.pop %v1044
    %v1046 = vadd.f32 %v1045, 1.0
    %v1047 = vrcp.pop %v1046
    %v1048 = vmul.f32 1.0, %v1047
    %v1049 = vtanh.pop %v1042
    %v1050 = vmul.f32 %v1048, 0.0
    %1052 = vrot.lane.b32.xlu0 %v1049, 64
    %v1053 = vpop.permute.xlu0 %1052
    %v1055 = vmul.f32 %v1048, %v1053
    %1057 = vrot.lane.b32.xlu0 %v1055, 32
    %v1058 = vpop.permute.xlu0 %1057
    %v1060 = vadd.f32 %v1050, %v1058
    %v1061 = vtanh.pop %v1060
    %1063 = vrot.lane.b32.xlu0 %v1061, 64
    %v1064 = vpop.permute.xlu0 %1063
    %v1066 = vmul.f32 %v1048, %v1064
    %v1067 = vpack.c.bf16 %v1066, %v1066
    %1069 = vrot.lane.b32.xlu0 %v1067, 32
    %v1070 = vpop.permute.xlu0 %1069
    %v1072 = vsel %vm138, %v1070, 0
    %1074 = vmatprep.subr.bf16.mxu0 0
    %1075 = vmatpush1.bf16.msra.mxu0 0
    %1076 = vmatprep.subr.bf16.mxu0 0
    %1077 = vmatpush1.bf16.msra.mxu0 0
    %1078 = vmatprep.subr.bf16.mxu0 0
    %1079 = vmatpush1.bf16.msra.mxu0 0
    %1080 = vmatprep.subr.bf16.mxu0 0
    %1081 = vmatpush1.bf16.msra.mxu0 0
    %1082 = vmatprep.subr.bf16.mxu0 0
    %1083 = vmatpush1.bf16.msra.mxu0 0
    %1084 = vmatprep.subr.bf16.mxu0 0
    %1085 = vmatpush1.bf16.msra.mxu0 0
    %1086 = vmatprep.subr.bf16.mxu0 0
    %1087 = vmatpush1.bf16.msra.mxu0 %v999
    %1088 = vmatprep.subr.bf16.mxu0 0
    %1089 = vmatpush1.bf16.msra.mxu0 %v998
    %1090 = vmatprep.subr.bf16.mxu0 0
    %1091 = vmatpush2.bf16.msra.mxu0 0
    %1092 = vmatprep.subr.bf16.mxu0 0
    %1093 = vmatpush2.bf16.msra.mxu0 0
    %1094 = vmatprep.subr.bf16.mxu0 0
    %1095 = vmatpush2.bf16.msra.mxu0 0
    %1096 = vmatprep.subr.bf16.mxu0 0
    %1097 = vmatpush2.bf16.msra.mxu0 0
    %1098 = vmatprep.subr.bf16.mxu0 0
    %1099 = vmatpush2.bf16.msra.mxu0 0
    %1100 = vmatprep.subr.bf16.mxu0 0
    %1101 = vmatpush2.bf16.msra.mxu0 0
    %1102 = vmatprep.subr.bf16.mxu0 0
    %1103 = vmatpush2.bf16.msra.mxu0 0
    %1104 = vmatprep.subr.bf16.mxu0 0
    %1105 = vmatpush2.bf16.msra.mxu0 0
    %1106 = vmatprep.mubr.bf16.mxu0 0
    %1107 = vmatmul.mubr.bf16.gmra.mxu0 %v1072
    %v1108 = vpop.f32.mrf.mxu0
    %v1109 = vadd.f32 0.0, %v1108
    %v1110 = vpop.f32.mrf.mxu0
    %v1111 = vpop.f32.mrf.mxu0
    %v1112 = vpop.f32.mrf.mxu0
    %1113 = vdwg.mxu0
    %v1114 = vadd.f32 %v963, %v1109
    %v1115 = vxor.u32 %v1114, 2147483648
    %v1116 = vmul.f32 %v1115, 1.442695
    %v1117 = vpow.pop %v1116
    %v1118 = vadd.f32 %v1117, 1.0
    %v1119 = vrcp.pop %v1118
    %v1120 = vmul.f32 1.0, %v1119
    %v1121 = vtanh.pop %v1114
    %v1122 = vmul.f32 %v1120, %v1060
    %1124 = vrot.lane.b32.xlu0 %v1121, 64
    %v1125 = vpop.permute.xlu0 %1124
    %v1127 = vmul.f32 %v1120, %v1125
    %1129 = vrot.lane.b32.xlu0 %v1127, 32
    %v1130 = vpop.permute.xlu0 %1129
    %v1132 = vadd.f32 %v1122, %v1130
    %v1133 = vtanh.pop %v1132
    %1135 = vrot.lane.b32.xlu0 %v1133, 64
    %v1136 = vpop.permute.xlu0 %1135
    %v1138 = vmul.f32 %v1120, %v1136
    %v1139 = vpack.c.bf16 %v1138, %v1138
    %1141 = vrot.lane.b32.xlu0 %v1139, 32
    %v1142 = vpop.permute.xlu0 %1141
    %v1144 = vsel %vm138, %v1142, 0
    %1146 = vmatprep.subr.bf16.mxu0 0
    %1147 = vmatpush1.bf16.msra.mxu0 0
    %1148 = vmatprep.subr.bf16.mxu0 0
    %1149 = vmatpush1.bf16.msra.mxu0 0
    %1150 = vmatprep.subr.bf16.mxu0 0
    %1151 = vmatpush1.bf16.msra.mxu0 0
    %1152 = vmatprep.subr.bf16.mxu0 0
    %1153 = vmatpush1.bf16.msra.mxu0 0
    %1154 = vmatprep.subr.bf16.mxu0 0
    %1155 = vmatpush1.bf16.msra.mxu0 0
    %1156 = vmatprep.subr.bf16.mxu0 0
    %1157 = vmatpush1.bf16.msra.mxu0 0
    %1158 = vmatprep.subr.bf16.mxu0 0
    %1159 = vmatpush1.bf16.msra.mxu0 %v999
    %1160 = vmatprep.subr.bf16.mxu0 0
    %1161 = vmatpush1.bf16.msra.mxu0 %v998
    %1162 = vmatprep.subr.bf16.mxu0 0
    %1163 = vmatpush2.bf16.msra.mxu0 0
    %1164 = vmatprep.subr.bf16.mxu0 0
    %1165 = vmatpush2.bf16.msra.mxu0 0
    %1166 = vmatprep.subr.bf16.mxu0 0
    %1167 = vmatpush2.bf16.msra.mxu0 0
    %1168 = vmatprep.subr.bf16.mxu0 0
    %1169 = vmatpush2.bf16.msra.mxu0 0
    %1170 = vmatprep.subr.bf16.mxu0 0
    %1171 = vmatpush2.bf16.msra.mxu0 0
    %1172 = vmatprep.subr.bf16.mxu0 0
    %1173 = vmatpush2.bf16.msra.mxu0 0
    %1174 = vmatprep.subr.bf16.mxu0 0
    %1175 = vmatpush2.bf16.msra.mxu0 0
    %1176 = vmatprep.subr.bf16.mxu0 0
    %1177 = vmatpush2.bf16.msra.mxu0 0
    %1178 = vmatprep.mubr.bf16.mxu0 0
    %1179 = vmatmul.mubr.bf16.gmra.mxu0 %v1144
    %v1180 = vpop.f32.mrf.mxu0
    %v1181 = vadd.f32 0.0, %v1180
    %v1182 = vpop.f32.mrf.mxu0
    %v1183 = vpop.f32.mrf.mxu0
    %v1184 = vpop.f32.mrf.mxu0
    %1185 = vdwg.mxu0
    %v1186 = vadd.f32 %v968, %v1181
    %v1187 = vxor.u32 %v1186, 2147483648
    %v1188 = vmul.f32 %v1187, 1.442695
    %v1189 = vpow.pop %v1188
    %v1190 = vadd.f32 %v1189, 1.0
    %v1191 = vrcp.pop %v1190
    %v1192 = vmul.f32 1.0, %v1191
    %v1193 = vtanh.pop %v1186
    %v1194 = vmul.f32 %v1192, %v1132
    %1196 = vrot.lane.b32.xlu0 %v1193, 64
    %v1197 = vpop.permute.xlu0 %1196
    %v1199 = vmul.f32 %v1192, %v1197
    %1201 = vrot.lane.b32.xlu0 %v1199, 32
    %v1202 = vpop.permute.xlu0 %1201
    %v1204 = vadd.f32 %v1194, %v1202
    %v1205 = vtanh.pop %v1204
    %1207 = vrot.lane.b32.xlu0 %v1205, 64
    %v1208 = vpop.permute.xlu0 %1207
    %v1210 = vmul.f32 %v1192, %v1208
    %v1211 = vpack.c.bf16 %v1210, %v1210
    %1213 = vrot.lane.b32.xlu0 %v1211, 32
    %v1214 = vpop.permute.xlu0 %1213
    %v1216 = vsel %vm138, %v1214, 0
    %1218 = vmatprep.subr.bf16.mxu0 0
    %1219 = vmatpush1.bf16.msra.mxu0 0
    %1220 = vmatprep.subr.bf16.mxu0 0
    %1221 = vmatpush1.bf16.msra.mxu0 0
    %1222 = vmatprep.subr.bf16.mxu0 0
    %1223 = vmatpush1.bf16.msra.mxu0 0
    %1224 = vmatprep.subr.bf16.mxu0 0
    %1225 = vmatpush1.bf16.msra.mxu0 0
    %1226 = vmatprep.subr.bf16.mxu0 0
    %1227 = vmatpush1.bf16.msra.mxu0 0
    %1228 = vmatprep.subr.bf16.mxu0 0
    %1229 = vmatpush1.bf16.msra.mxu0 0
    %1230 = vmatprep.subr.bf16.mxu0 0
    %1231 = vmatpush1.bf16.msra.mxu0 %v999
    %1232 = vmatprep.subr.bf16.mxu0 0
    %1233 = vmatpush1.bf16.msra.mxu0 %v998
    %1234 = vmatprep.subr.bf16.mxu0 0
    %1235 = vmatpush2.bf16.msra.mxu0 0
    %1236 = vmatprep.subr.bf16.mxu0 0
    %1237 = vmatpush2.bf16.msra.mxu0 0
    %1238 = vmatprep.subr.bf16.mxu0 0
    %1239 = vmatpush2.bf16.msra.mxu0 0
    %1240 = vmatprep.subr.bf16.mxu0 0
    %1241 = vmatpush2.bf16.msra.mxu0 0
    %1242 = vmatprep.subr.bf16.mxu0 0
    %1243 = vmatpush2.bf16.msra.mxu0 0
    %1244 = vmatprep.subr.bf16.mxu0 0
    %1245 = vmatpush2.bf16.msra.mxu0 0
    %1246 = vmatprep.subr.bf16.mxu0 0
    %1247 = vmatpush2.bf16.msra.mxu0 0
    %1248 = vmatprep.subr.bf16.mxu0 0
    %1249 = vmatpush2.bf16.msra.mxu0 0
    %1250 = vmatprep.mubr.bf16.mxu0 0
    %1251 = vmatmul.mubr.bf16.gmra.mxu0 %v1216
    %v1252 = vpop.f32.mrf.mxu0
    %v1253 = vadd.f32 0.0, %v1252
    %v1254 = vpop.f32.mrf.mxu0
    %v1255 = vpop.f32.mrf.mxu0
    %v1256 = vpop.f32.mrf.mxu0
    %1257 = vdwg.mxu0
    %v1258 = vadd.f32 %v971, %v1253
    %v1259 = vxor.u32 %v1258, 2147483648
    %v1260 = vmul.f32 %v1259, 1.442695
    %v1261 = vpow.pop %v1260
    %v1262 = vadd.f32 %v1261, 1.0
    %v1263 = vrcp.pop %v1262
    %v1264 = vmul.f32 1.0, %v1263
    %v1265 = vtanh.pop %v1258
    %v1266 = vmul.f32 %v1264, %v1204
    %1268 = vrot.lane.b32.xlu0 %v1265, 64
    %v1269 = vpop.permute.xlu0 %1268
    %v1271 = vmul.f32 %v1264, %v1269
    %1273 = vrot.lane.b32.xlu0 %v1271, 32
    %v1274 = vpop.permute.xlu0 %1273
    %v1276 = vadd.f32 %v1266, %v1274
    %v1277 = vtanh.pop %v1276
    %1279 = vrot.lane.b32.xlu0 %v1277, 64
    %v1280 = vpop.permute.xlu0 %1279
    %v1282 = vmul.f32 %v1264, %v1280
    %v1283 = vpack.c.bf16 %v1282, %v1282
    %1285 = vrot.lane.b32.xlu0 %v1283, 32
    %v1286 = vpop.permute.xlu0 %1285
    %v1288 = vsel %vm138, %v1286, 0
    %1290 = vmatprep.subr.bf16.mxu0 0
    %1291 = vmatpush1.bf16.msra.mxu0 0
    %1292 = vmatprep.subr.bf16.mxu0 0
    %1293 = vmatpush1.bf16.msra.mxu0 0
    %1294 = vmatprep.subr.bf16.mxu0 0
    %1295 = vmatpush1.bf16.msra.mxu0 0
    %1296 = vmatprep.subr.bf16.mxu0 0
    %1297 = vmatpush1.bf16.msra.mxu0 0
    %1298 = vmatprep.subr.bf16.mxu0 0
    %1299 = vmatpush1.bf16.msra.mxu0 0
    %1300 = vmatprep.subr.bf16.mxu0 0
    %1301 = vmatpush1.bf16.msra.mxu0 0
    %1302 = vmatprep.subr.bf16.mxu0 0
    %1303 = vmatpush1.bf16.msra.mxu0 %v999
    %1304 = vmatprep.subr.bf16.mxu0 0
    %1305 = vmatpush1.bf16.msra.mxu0 %v998
    %1306 = vmatprep.subr.bf16.mxu0 0
    %1307 = vmatpush2.bf16.msra.mxu0 0
    %1308 = vmatprep.subr.bf16.mxu0 0
    %1309 = vmatpush2.bf16.msra.mxu0 0
    %1310 = vmatprep.subr.bf16.mxu0 0
    %1311 = vmatpush2.bf16.msra.mxu0 0
    %1312 = vmatprep.subr.bf16.mxu0 0
    %1313 = vmatpush2.bf16.msra.mxu0 0
    %1314 = vmatprep.subr.bf16.mxu0 0
    %1315 = vmatpush2.bf16.msra.mxu0 0
    %1316 = vmatprep.subr.bf16.mxu0 0
    %1317 = vmatpush2.bf16.msra.mxu0 0
    %1318 = vmatprep.subr.bf16.mxu0 0
    %1319 = vmatpush2.bf16.msra.mxu0 0
    %1320 = vmatprep.subr.bf16.mxu0 0
    %1321 = vmatpush2.bf16.msra.mxu0 0
    %1322 = vmatprep.mubr.bf16.mxu0 0
    %1323 = vmatmul.mubr.bf16.gmra.mxu0 %v1288
    %v1324 = vpop.f32.mrf.mxu0
    %v1325 = vadd.f32 0.0, %v1324
    %v1326 = vpop.f32.mrf.mxu0
    %v1327 = vpop.f32.mrf.mxu0
    %v1328 = vpop.f32.mrf.mxu0
    %1329 = vdwg.mxu0
    %v1330 = vadd.f32 %v976, %v1325
    %v1331 = vxor.u32 %v1330, 2147483648
    %v1332 = vmul.f32 %v1331, 1.442695
    %v1333 = vpow.pop %v1332
    %v1334 = vadd.f32 %v1333, 1.0
    %v1335 = vrcp.pop %v1334
    %v1336 = vmul.f32 1.0, %v1335
    %v1337 = vtanh.pop %v1330
    %v1338 = vmul.f32 %v1336, %v1276
    %1340 = vrot.lane.b32.xlu0 %v1337, 64
    %v1341 = vpop.permute.xlu0 %1340
    %v1343 = vmul.f32 %v1336, %v1341
    %1345 = vrot.lane.b32.xlu0 %v1343, 32
    %v1346 = vpop.permute.xlu0 %1345
    %v1348 = vadd.f32 %v1338, %v1346
    %v1349 = vtanh.pop %v1348
    %1351 = vrot.lane.b32.xlu0 %v1349, 64
    %v1352 = vpop.permute.xlu0 %1351
    %v1354 = vmul.f32 %v1336, %v1352
    %v1355 = vpack.c.bf16 %v1354, %v1354
    %1357 = vrot.lane.b32.xlu0 %v1355, 32
    %v1358 = vpop.permute.xlu0 %1357
    %v1360 = vsel %vm138, %v1358, 0
    %1362 = vmatprep.subr.bf16.mxu0 0
    %1363 = vmatpush1.bf16.msra.mxu0 0
    %1364 = vmatprep.subr.bf16.mxu0 0
    %1365 = vmatpush1.bf16.msra.mxu0 0
    %1366 = vmatprep.subr.bf16.mxu0 0
    %1367 = vmatpush1.bf16.msra.mxu0 0
    %1368 = vmatprep.subr.bf16.mxu0 0
    %1369 = vmatpush1.bf16.msra.mxu0 0
    %1370 = vmatprep.subr.bf16.mxu0 0
    %1371 = vmatpush1.bf16.msra.mxu0 0
    %1372 = vmatprep.subr.bf16.mxu0 0
    %1373 = vmatpush1.bf16.msra.mxu0 0
    %1374 = vmatprep.subr.bf16.mxu0 0
    %1375 = vmatpush1.bf16.msra.mxu0 %v999
    %1376 = vmatprep.subr.bf16.mxu0 0
    %1377 = vmatpush1.bf16.msra.mxu0 %v998
    %1378 = vmatprep.subr.bf16.mxu0 0
    %1379 = vmatpush2.bf16.msra.mxu0 0
    %1380 = vmatprep.subr.bf16.mxu0 0
    %1381 = vmatpush2.bf16.msra.mxu0 0
    %1382 = vmatprep.subr.bf16.mxu0 0
    %1383 = vmatpush2.bf16.msra.mxu0 0
    %1384 = vmatprep.subr.bf16.mxu0 0
    %1385 = vmatpush2.bf16.msra.mxu0 0
    %1386 = vmatprep.subr.bf16.mxu0 0
    %1387 = vmatpush2.bf16.msra.mxu0 0
    %1388 = vmatprep.subr.bf16.mxu0 0
    %1389 = vmatpush2.bf16.msra.mxu0 0
    %1390 = vmatprep.subr.bf16.mxu0 0
    %1391 = vmatpush2.bf16.msra.mxu0 0
    %1392 = vmatprep.subr.bf16.mxu0 0
    %1393 = vmatpush2.bf16.msra.mxu0 0
    %1394 = vmatprep.mubr.bf16.mxu0 0
    %1395 = vmatmul.mubr.bf16.gmra.mxu0 %v1360
    %v1396 = vpop.f32.mrf.mxu0
    %v1397 = vadd.f32 0.0, %v1396
    %v1398 = vpop.f32.mrf.mxu0
    %v1399 = vpop.f32.mrf.mxu0
    %v1400 = vpop.f32.mrf.mxu0
    %1401 = vdwg.mxu0
    %v1402 = vadd.f32 %v979, %v1397
    %v1403 = vxor.u32 %v1402, 2147483648
    %v1404 = vmul.f32 %v1403, 1.442695
    %v1405 = vpow.pop %v1404
    %v1406 = vadd.f32 %v1405, 1.0
    %v1407 = vrcp.pop %v1406
    %v1408 = vmul.f32 1.0, %v1407
    %v1409 = vtanh.pop %v1402
    %v1410 = vmul.f32 %v1408, %v1348
    %1412 = vrot.lane.b32.xlu0 %v1409, 64
    %v1413 = vpop.permute.xlu0 %1412
    %v1415 = vmul.f32 %v1408, %v1413
    %1417 = vrot.lane.b32.xlu0 %v1415, 32
    %v1418 = vpop.permute.xlu0 %1417
    %v1420 = vadd.f32 %v1410, %v1418
    %v1421 = vtanh.pop %v1420
    %1423 = vrot.lane.b32.xlu0 %v1421, 64
    %v1424 = vpop.permute.xlu0 %1423
    %v1426 = vmul.f32 %v1408, %v1424
    %v1427 = vpack.c.bf16 %v1426, %v1426
    %1429 = vrot.lane.b32.xlu0 %v1427, 32
    %v1430 = vpop.permute.xlu0 %1429
    %v1432 = vsel %vm138, %v1430, 0
    %1434 = vmatprep.subr.bf16.mxu0 0
    %1435 = vmatpush1.bf16.msra.mxu0 0
    %1436 = vmatprep.subr.bf16.mxu0 0
    %1437 = vmatpush1.bf16.msra.mxu0 0
    %1438 = vmatprep.subr.bf16.mxu0 0
    %1439 = vmatpush1.bf16.msra.mxu0 0
    %1440 = vmatprep.subr.bf16.mxu0 0
    %1441 = vmatpush1.bf16.msra.mxu0 0
    %1442 = vmatprep.subr.bf16.mxu0 0
    %1443 = vmatpush1.bf16.msra.mxu0 0
    %1444 = vmatprep.subr.bf16.mxu0 0
    %1445 = vmatpush1.bf16.msra.mxu0 0
    %1446 = vmatprep.subr.bf16.mxu0 0
    %1447 = vmatpush1.bf16.msra.mxu0 %v999
    %1448 = vmatprep.subr.bf16.mxu0 0
    %1449 = vmatpush1.bf16.msra.mxu0 %v998
    %1450 = vmatprep.subr.bf16.mxu0 0
    %1451 = vmatpush2.bf16.msra.mxu0 0
    %1452 = vmatprep.subr.bf16.mxu0 0
    %1453 = vmatpush2.bf16.msra.mxu0 0
    %1454 = vmatprep.subr.bf16.mxu0 0
    %1455 = vmatpush2.bf16.msra.mxu0 0
    %1456 = vmatprep.subr.bf16.mxu0 0
    %1457 = vmatpush2.bf16.msra.mxu0 0
    %1458 = vmatprep.subr.bf16.mxu0 0
    %1459 = vmatpush2.bf16.msra.mxu0 0
    %1460 = vmatprep.subr.bf16.mxu0 0
    %1461 = vmatpush2.bf16.msra.mxu0 0
    %1462 = vmatprep.subr.bf16.mxu0 0
    %1463 = vmatpush2.bf16.msra.mxu0 0
    %1464 = vmatprep.subr.bf16.mxu0 0
    %1465 = vmatpush2.bf16.msra.mxu0 0
    %1466 = vmatprep.mubr.bf16.mxu0 0
    %1467 = vmatmul.mubr.bf16.gmra.mxu0 %v1432
    %v1468 = vpop.f32.mrf.mxu0
    %v1469 = vadd.f32 0.0, %v1468
    %v1470 = vpop.f32.mrf.mxu0
    %v1471 = vpop.f32.mrf.mxu0
    %v1472 = vpop.f32.mrf.mxu0
    %1473 = vdwg.mxu0
    %v1474 = vadd.f32 %v984, %v1469
    %v1475 = vxor.u32 %v1474, 2147483648
    %v1476 = vmul.f32 %v1475, 1.442695
    %v1477 = vpow.pop %v1476
    %v1478 = vadd.f32 %v1477, 1.0
    %v1479 = vrcp.pop %v1478
    %v1480 = vmul.f32 1.0, %v1479
    %v1481 = vtanh.pop %v1474
    %v1482 = vmul.f32 %v1480, %v1420
    %1484 = vrot.lane.b32.xlu0 %v1481, 64
    %v1485 = vpop.permute.xlu0 %1484
    %v1487 = vmul.f32 %v1480, %v1485
    %1489 = vrot.lane.b32.xlu0 %v1487, 32
    %v1490 = vpop.permute.xlu0 %1489
    %v1492 = vadd.f32 %v1482, %v1490
    %v1493 = vtanh.pop %v1492
    %1495 = vrot.lane.b32.xlu0 %v1493, 64
    %v1496 = vpop.permute.xlu0 %1495
    %v1498 = vmul.f32 %v1480, %v1496
    %v1499 = vpack.c.bf16 %v1498, %v1498
    %1501 = vrot.lane.b32.xlu0 %v1499, 32
    %v1502 = vpop.permute.xlu0 %1501
    %v1504 = vsel %vm138, %v1502, 0
    %1506 = vmatprep.subr.bf16.mxu0 0
    %1507 = vmatpush1.bf16.msra.mxu0 0
    %1508 = vmatprep.subr.bf16.mxu0 0
    %1509 = vmatpush1.bf16.msra.mxu0 0
    %1510 = vmatprep.subr.bf16.mxu0 0
    %1511 = vmatpush1.bf16.msra.mxu0 0
    %1512 = vmatprep.subr.bf16.mxu0 0
    %1513 = vmatpush1.bf16.msra.mxu0 0
    %1514 = vmatprep.subr.bf16.mxu0 0
    %1515 = vmatpush1.bf16.msra.mxu0 0
    %1516 = vmatprep.subr.bf16.mxu0 0
    %1517 = vmatpush1.bf16.msra.mxu0 0
    %1518 = vmatprep.subr.bf16.mxu0 0
    %1519 = vmatpush1.bf16.msra.mxu0 %v999
    %1520 = vmatprep.subr.bf16.mxu0 0
    %1521 = vmatpush1.bf16.msra.mxu0 %v998
    %1522 = vmatprep.subr.bf16.mxu0 0
    %1523 = vmatpush2.bf16.msra.mxu0 0
    %1524 = vmatprep.subr.bf16.mxu0 0
    %1525 = vmatpush2.bf16.msra.mxu0 0
    %1526 = vmatprep.subr.bf16.mxu0 0
    %1527 = vmatpush2.bf16.msra.mxu0 0
    %1528 = vmatprep.subr.bf16.mxu0 0
    %1529 = vmatpush2.bf16.msra.mxu0 0
    %1530 = vmatprep.subr.bf16.mxu0 0
    %1531 = vmatpush2.bf16.msra.mxu0 0
    %1532 = vmatprep.subr.bf16.mxu0 0
    %1533 = vmatpush2.bf16.msra.mxu0 0
    %1534 = vmatprep.subr.bf16.mxu0 0
    %1535 = vmatpush2.bf16.msra.mxu0 0
    %1536 = vmatprep.subr.bf16.mxu0 0
    %1537 = vmatpush2.bf16.msra.mxu0 0
    %1538 = vmatprep.mubr.bf16.mxu0 0
    %1539 = vmatmul.mubr.bf16.gmra.mxu0 %v1504
    %v1540 = vpop.f32.mrf.mxu0
    %v1541 = vadd.f32 0.0, %v1540
    %v1542 = vpop.f32.mrf.mxu0
    %v1543 = vpop.f32.mrf.mxu0
    %v1544 = vpop.f32.mrf.mxu0
    %1545 = vdwg.mxu0
    %v1546 = vadd.f32 %v987, %v1541
    %v1547 = vxor.u32 %v1546, 2147483648
    %v1548 = vmul.f32 %v1547, 1.442695
    %v1549 = vpow.pop %v1548
    %v1550 = vadd.f32 %v1549, 1.0
    %v1551 = vrcp.pop %v1550
    %v1552 = vmul.f32 1.0, %v1551
    %v1553 = vtanh.pop %v1546
    %v1554 = vmul.f32 %v1552, %v1492
    %1556 = vrot.lane.b32.xlu0 %v1553, 64
    %v1557 = vpop.permute.xlu0 %1556
    %v1559 = vmul.f32 %v1552, %v1557
    %1561 = vrot.lane.b32.xlu0 %v1559, 32
    %v1562 = vpop.permute.xlu0 %1561
    %v1564 = vadd.f32 %v1554, %v1562
    %v1565 = vtanh.pop %v1564
    %1567 = vrot.lane.b32.xlu0 %v1565, 64
    %v1568 = vpop.permute.xlu0 %1567
    %v1570 = vmul.f32 %v1552, %v1568
    %v1571 = vpack.c.bf16 %v1570, %v1570
    %v1572 = vld [vmem:[%s7] sm:$0xf]
    %v1573 = vld [vmem:[%s7 + $0x4] sm:$0xf]
    %v1574 = vld [vmem:[%s7 + $0x8] sm:$0xf]
    %v1575 = vld [vmem:[%s7 + $0xc] sm:$0xf]
    %v1576 = vld [vmem:[%s8] sm:$0x1]
    %v1578 = vlaneseq
    %v1579 = vshrl.u32 %v1578, 7
    %v1580 = vsub.s32 0, %v1579
    %v1581 = vrot.slane %v1576, %v1580
    %1584 = vrot.lane.b32.xlu0 %v1571, 32
    %v1585 = vpop.permute.xlu0 %1584
    %v1590 = vunpack.c.l.b16 %v1572
    %v1591 = vunpack.c.l.b16 %v1573
    %v1592 = vunpack.c.l.b16 %v1574
    %v1593 = vunpack.c.l.b16 %v1575
    %v1594 = vpack.c.b16 %v1591, %v1590
    %v1595 = vpack.c.b16 %v1593, %v1592
    %v1599 = vsel %vm138, %v1585, 0
    %1601 = vmatprep.subr.bf16.mxu0 0
    %1602 = vmatpush1.bf16.msra.mxu0 0
    %1603 = vmatprep.subr.bf16.mxu0 0
    %1604 = vmatpush1.bf16.msra.mxu0 0
    %1605 = vmatprep.subr.bf16.mxu0 0
    %1606 = vmatpush1.bf16.msra.mxu0 0
    %1607 = vmatprep.subr.bf16.mxu0 0
    %1608 = vmatpush1.bf16.msra.mxu0 0
    %1609 = vmatprep.subr.bf16.mxu0 0
    %1610 = vmatpush1.bf16.msra.mxu0 0
    %1611 = vmatprep.subr.bf16.mxu0 0
    %1612 = vmatpush1.bf16.msra.mxu0 0
    %1613 = vmatprep.subr.bf16.mxu0 0
    %1614 = vmatpush1.bf16.msra.mxu0 %v1595
    %1615 = vmatprep.subr.bf16.mxu0 0
    %1616 = vmatpush1.bf16.msra.mxu0 %v1594
    %1617 = vmatprep.subr.bf16.mxu0 0
    %1618 = vmatpush2.bf16.msra.mxu0 0
    %1619 = vmatprep.subr.bf16.mxu0 0
    %1620 = vmatpush2.bf16.msra.mxu0 0
    %1621 = vmatprep.subr.bf16.mxu0 0
    %1622 = vmatpush2.bf16.msra.mxu0 0
    %1623 = vmatprep.subr.bf16.mxu0 0
    %1624 = vmatpush2.bf16.msra.mxu0 0
    %1625 = vmatprep.subr.bf16.mxu0 0
    %1626 = vmatpush2.bf16.msra.mxu0 0
    %1627 = vmatprep.subr.bf16.mxu0 0
    %1628 = vmatpush2.bf16.msra.mxu0 0
    %1629 = vmatprep.subr.bf16.mxu0 0
    %1630 = vmatpush2.bf16.msra.mxu0 0
    %1631 = vmatprep.subr.bf16.mxu0 0
    %1632 = vmatpush2.bf16.msra.mxu0 0
    %1633 = vmatprep.mubr.bf16.mxu0 0
    %1634 = vmatmul.mubr.bf16.gmra.mxu0 %v1599
    %v1635 = vpop.f32.mrf.mxu0
    %v1636 = vadd.f32 %v1581, %v1635
    %v1637 = vpop.f32.mrf.mxu0
    %v1638 = vpop.f32.mrf.mxu0
    %v1639 = vpop.f32.mrf.mxu0
    %1640 = vdwg.mxu0
    %v1641 = vxor.u32 %v1636, 2147483648
    %v1642 = vmul.f32 %v1641, 1.442695
    %v1643 = vpow.pop %v1642
    %v1644 = vadd.f32 %v1643, 1.0
    %v1645 = vrcp.pop %v1644
    %v1646 = vmul.f32 1.0, %v1645
    %vm1647 = vcmask 130048
    %1648 = vst.msk [vmem:[#allocation9] sm:$0xff] %vm1647, %v1646
    // Predicated region
    $region50: #{tpu_custom_call.1} parent=1 // pred_check
      _
    $region51: #{tpu_custom_call.1} parent=1 // pred_check_branch
      %1650 = sbr.rel (0) target = $region53
    $region52: #{tpu_custom_call.1} parent=1 // pred_region
      %s1652 = ssub.s32 128, 128
      %1653 = vsyncadd [#allocation5], %s1652
      %s1655 = sshll.u32 [#allocation9], 4
      %s1656 = int_to_ptr.vmem [resolvable:$true] %s1655
      %1658 = dma.vmem_to_hbm [thread:$0]  %s1656, 128, %s9, [#allocation5]
    $region53: #{tpu_custom_call.1} parent=1 // pred_fallthru
      _
    // Predicated region
    $region54: #{tpu_custom_call.1} parent=1 // pred_check
      _
    $region55: #{tpu_custom_call.1} parent=1 // pred_check_branch
      %1660 = sbr.rel (0) target = $region57
    $region56: #{tpu_custom_call.1} parent=1 // pred_region
      %1661 = dma.done [#allocation5], 128
    $region57: #{tpu_custom_call.1} parent=1 // pred_fallthru
      _
    %1662 = vsyncpa [#allocation4], 1
    %1663 = vsyncpa [#allocation7], 1
    %1664 = vsyncpa [#allocation5], 1

</llo_original>
